<compile_context>
chip_gen: v5e
topology: v5e:2x2
jax: 0.10.0
libtpu: 0.0.40
codegen_flags: <defaults>
</compile_context>

<pallas_src>
import math
import functools

import jax
import jax.numpy as jnp
from jax import lax
from jax.experimental import pallas as pl
from jax.experimental.pallas import tpu as pltpu


# -----------------------------------------------------------------------------
# Tile constants.
#   v6e/v7x: 256-wide N tiles feed the 2x256x256 MXU; v5e is fine with 128.
#   LIN_TK=512 keeps the K pipeline short for production hidden dims.
#   ATTN_TQ/ATTN_TKV: 128 here (demo S=256 exercises interior+diagonal paths);
#   raise to 256 for long-S production.
# -----------------------------------------------------------------------------
LIN_TM, LIN_TN, LIN_TK = 256, 256, 512
ATTN_TQ, ATTN_TKV = 128, 128
VMEM_LIMIT = 48 * 1024 * 1024      # explicit budget; safe on v7x (64 MiB phys)


def _fit(pref, dim):
    """Largest 'nice' tile <= pref that divides dim (falls back to full dim)."""
    if dim % pref == 0:
        return pref
    for cand in (512, 256, 128, 16):
        if cand <= pref and dim % cand == 0:
            return cand
    return dim


def _heads_per_tile(n_total, group, pref_tn):
    """How many `group`-wide heads fit in one N tile (tile must divide N)."""
    max_h = max(1, min(pref_tn // group, n_total // group))
    for h in range(max_h, 0, -1):
        if n_total % (h * group) == 0:
            return h
    return 1


def _fake_quant_rows(x, bits):
    """Per-row symmetric fake quantization over the last axis (f32 math)."""
    qmax = jnp.float32(2.0 ** (bits - 1) - 1.0)
    absmax = jnp.max(jnp.abs(x), axis=-1, keepdims=True)
    scale = jnp.where(absmax == 0.0, jnp.float32(1.0), absmax / qmax)
    return jnp.round(x / scale) * scale


# -----------------------------------------------------------------------------
# Tiled linear kernel (optional fused per-head fake-quant epilogue).  bf16
# inputs, f32 VMEM accumulator, bf16 output.
# -----------------------------------------------------------------------------
def _linear_kernel(x_ref, w_ref, o_ref, acc_ref, *, quant_bits, quant_group):
    @pl.when(pl.program_id(2) == 0)
    def _():
        acc_ref[...] = jnp.zeros_like(acc_ref)

    acc_ref[...] += jnp.dot(x_ref[...], w_ref[...],
                            preferred_element_type=jnp.float32)

    @pl.when(pl.program_id(2) == pl.num_programs(2) - 1)
    def _():
        y = acc_ref[...]
        if quant_bits is None:
            o_ref[...] = y.astype(o_ref.dtype)
        else:
            # v_quant fused: per (token, head) groups, 128-lane aligned slices.
            for g in range(y.shape[1] // quant_group):
                sl = slice(g * quant_group, (g + 1) * quant_group)
                o_ref[:, sl] = _fake_quant_rows(y[:, sl],
                                                quant_bits).astype(o_ref.dtype)


def pallas_linear(x2d, wt, *, quant_bits=None, quant_group=None,
                  out_dtype=jnp.bfloat16):
    """x2d: (M, K) bf16; wt: (K, N) bf16, transposed+cast ONCE at setup."""
    M, K = x2d.shape
    N = wt.shape[1]
    tm, tk = _fit(LIN_TM, M), _fit(LIN_TK, K)
    if quant_bits is not None:
        assert quant_group is not None and N % quant_group == 0
        tn = _heads_per_tile(N, quant_group, LIN_TN) * quant_group
    else:
        tn = _fit(LIN_TN, N)
        quant_group = tn

    kernel = functools.partial(_linear_kernel, quant_bits=quant_bits,
                               quant_group=quant_group)
    cost = pl.CostEstimate(flops=2 * M * N * K, transcendentals=0,
                           bytes_accessed=2 * (M * K + K * N + M * N))
    return pl.pallas_call(
        kernel,
        out_shape=jax.ShapeDtypeStruct((M, N), out_dtype),
        grid_spec=pltpu.PrefetchScalarGridSpec(
            num_scalar_prefetch=0,
            grid=(M // tm, N // tn, K // tk),
            in_specs=[
                pl.BlockSpec((tm, tk), lambda i, j, k: (i, k)),
                pl.BlockSpec((tk, tn), lambda i, j, k: (k, j)),
            ],
            out_specs=pl.BlockSpec((tm, tn), lambda i, j, k: (i, j)),
            scratch_shapes=[pltpu.VMEM((tm, tn), jnp.float32)],
        ),
        compiler_params=pltpu.CompilerParams(
            dimension_semantics=("parallel", "parallel", "arbitrary"),
            vmem_limit_bytes=VMEM_LIMIT),
        cost_estimate=cost,
    )(x2d, wt)


# -----------------------------------------------------------------------------
# Q/K projection kernel: matmul + fused (k_quant) -> RoPE -> scale epilogue.
# N tile holds `hpt` heads; the epilogue works per 128-wide head slice.
# -----------------------------------------------------------------------------
def _linear_rope_kernel(x_ref, w_ref, cos_ref, sin_ref, o_ref, acc_ref, *,
                        quant_bits, scale, head_dim):
    @pl.when(pl.program_id(2) == 0)
    def _():
        acc_ref[...] = jnp.zeros_like(acc_ref)

    acc_ref[...] += jnp.dot(x_ref[...], w_ref[...],
                            preferred_element_type=jnp.float32)

    @pl.when(pl.program_id(2) == pl.num_programs(2) - 1)
    def _():
        y = acc_ref[...]                       # (tm, hpt*head_dim) f32
        cos = cos_ref[...]
        sin = sin_ref[...]                     # sign-folded sin
        half = head_dim // 2
        for h in range(y.shape[1] // head_dim):
            sl = slice(h * head_dim, (h + 1) * head_dim)
            yh = y[:, sl]
            if quant_bits is not None:         # k_quant happens BEFORE RoPE
                yh = _fake_quant_rows(yh, quant_bits)
            # rotate_half(y) == roll(y, half) * [-1..-1, +1..+1]; the sign is
            # folded into sin outside the kernel; roll runs on the XLU slot.
            rot = pltpu.roll(yh, shift=half, axis=1)
            yh = yh * cos + rot * sin
            if scale != 1.0:                   # 1/sqrt(D) folded into Q
                yh = yh * scale
            o_ref[:, sl] = yh.astype(o_ref.dtype)


def pallas_proj_rope(x2d, wt, cos2d, sin2d_signed, head_dim, *,
                     quant_bits=None, scale=1.0, out_dtype=jnp.bfloat16):
    M, K = x2d.shape
    N = wt.shape[1]
    assert N % head_dim == 0
    tm, tk = _fit(LIN_TM, M), _fit(LIN_TK, K)
    tn = _heads_per_tile(N, head_dim, LIN_TN) * head_dim

    kernel = functools.partial(_linear_rope_kernel, quant_bits=quant_bits,
                               scale=scale, head_dim=head_dim)
    cost = pl.CostEstimate(
        flops=2 * M * N * K, transcendentals=0,
        bytes_accessed=2 * (M * K + K * N + M * N) + 8 * M * head_dim)
    return pl.pallas_call(
        kernel,
        out_shape=jax.ShapeDtypeStruct((M, N), out_dtype),
        grid_spec=pltpu.PrefetchScalarGridSpec(
            num_scalar_prefetch=0,
            grid=(M // tm, N // tn, K // tk),
            in_specs=[
                pl.BlockSpec((tm, tk), lambda i, j, k: (i, k)),
                pl.BlockSpec((tk, tn), lambda i, j, k: (k, j)),
                pl.BlockSpec((tm, head_dim), lambda i, j, k: (i, 0)),
                pl.BlockSpec((tm, head_dim), lambda i, j, k: (i, 0)),
            ],
            out_specs=pl.BlockSpec((tm, tn), lambda i, j, k: (i, j)),
            scratch_shapes=[pltpu.VMEM((tm, tn), jnp.float32)],
        ),
        compiler_params=pltpu.CompilerParams(
            dimension_semantics=("parallel", "parallel", "arbitrary"),
            vmem_limit_bytes=VMEM_LIMIT),
        cost_estimate=cost,
    )(x2d, wt, cos2d, sin2d_signed)


# -----------------------------------------------------------------------------
# Flash attention with VMEM-resident K/V per (batch, kv-head).
# Grid = (B, H, S//tq); the kv loop runs in-kernel (trip count qi interior
# tiles + one masked diagonal tile).  GQA via index_map (h // n_groups) --
# the K/V slab is fetched once per (b, kv-head) and reused across all q tiles
# and all q-heads in the group (Pallas skips re-DMA for unchanged block idx).
# -----------------------------------------------------------------------------
def _flash_attn_kernel(q_ref, k_ref, v_ref, o_ref, *, block_q, block_kv,
                       head_dim):
    qi = pl.program_id(2)
    q = q_ref[...]                              # (tq, D) bf16, RoPE'd+scaled

    def kv_block(j):
        start = pl.multiple_of(j * block_kv, block_kv)
        return (k_ref[pl.ds(start, block_kv), :],
                v_ref[pl.ds(start, block_kv), :])

    def online_update(s, v, carry):
        m_prev, l_prev, acc_prev = carry
        m_new = jnp.maximum(m_prev, jnp.max(s, axis=-1, keepdims=True))
        alpha = jnp.exp(m_prev - m_new)
        p = jnp.exp(s - m_new)
        l_new = alpha * l_prev + jnp.sum(p, axis=-1, keepdims=True)
        acc_new = alpha * acc_prev + jnp.dot(
            p.astype(jnp.bfloat16), v, preferred_element_type=jnp.float32)
        return m_new, l_new, acc_new

    def interior(j, carry):                     # fully visible tiles: no mask
        k, v = kv_block(j)
        s = lax.dot_general(q, k, (((1,), (1,)), ((), ())),
                            preferred_element_type=jnp.float32)
        return online_update(s, v, carry)

    m0 = jnp.full((block_q, 1), -jnp.inf, jnp.float32)
    l0 = jnp.zeros((block_q, 1), jnp.float32)
    acc0 = jnp.zeros((block_q, head_dim), jnp.float32)
    m, l, acc = lax.fori_loop(0, qi, interior, (m0, l0, acc0))

    # Diagonal tile: the only one that needs the causal mask (tq == tkv, so
    # the mask is simply the static lower triangle).
    k, v = kv_block(qi)
    s = lax.dot_general(q, k, (((1,), (1,)), ((), ())),
                        preferred_element_type=jnp.float32)
    rows = lax.broadcasted_iota(jnp.int32, s.shape, 0)
    cols = lax.broadcasted_iota(jnp.int32, s.shape, 1)
    s = jnp.where(rows >= cols, s, -1e30)
    m, l, acc = online_update(s, v, (m, l, acc))

    # Every row has at least its diagonal element unmasked, so l > 0.
    o_ref[...] = (acc * pl.reciprocal(l, approx=True)).astype(o_ref.dtype)


def pallas_flash_attention(q, k, v, *, num_heads, num_kv_heads, head_dim):
    """q: (B,S,H*D) bf16 RoPE'd & pre-scaled; k/v: (B,S,Hkv*D) bf16.
    Output written directly in (B, S, H*D) layout (bf16)."""
    B, S, _ = q.shape
    n_groups = num_heads // num_kv_heads
    tq = _fit(ATTN_TQ, S)
    tkv = _fit(ATTN_TKV, S)
    assert tq == tkv, "diagonal-tile causal masking assumes tq == tkv"

    kernel = functools.partial(_flash_attn_kernel, block_q=tq, block_kv=tkv,
                               head_dim=head_dim)

    def q_map(b, h, qi):
        return (b, qi, h)

    def kv_map(b, h, qi):
        return (b, 0, h // n_groups)     # full-S resident slab per kv head

    cost = pl.CostEstimate(
        flops=2 * B * num_heads * S * S * head_dim,
        transcendentals=B * num_heads * S * S // 2,
        bytes_accessed=2 * (2 * B * S * num_heads * head_dim
                            + 2 * B * S * num_kv_heads * head_dim))
    return pl.pallas_call(
        kernel,
        out_shape=jax.ShapeDtypeStruct((B, S, num_heads * head_dim), q.dtype),
        grid_spec=pltpu.PrefetchScalarGridSpec(
            num_scalar_prefetch=0,
            grid=(B, num_heads, S // tq),
            in_specs=[
                pl.BlockSpec((None, tq, head_dim), q_map),
                pl.BlockSpec((None, S, head_dim), kv_map),
                pl.BlockSpec((None, S, head_dim), kv_map),
            ],
            out_specs=pl.BlockSpec((None, tq, head_dim), q_map),
        ),
        compiler_params=pltpu.CompilerParams(
            dimension_semantics=("parallel", "parallel", "arbitrary"),
            vmem_limit_bytes=VMEM_LIMIT),
        cost_estimate=cost,
    )(q, k, v)


# -----------------------------------------------------------------------------
# Output projection with fused act_quant: tk == K so the per-token absmax over
# the whole hidden dim is visible; the quantized activation is computed once
# per row tile (j == 0) into a bf16 VMEM scratch and reused for every N tile.
# This removes the separate act_quant HBM round trip entirely.
# -----------------------------------------------------------------------------
def _oproj_actquant_kernel(x_ref, w_ref, o_ref, xq_ref, *, quant_bits):
    @pl.when(pl.program_id(1) == 0)
    def _():
        xq_ref[...] = _fake_quant_rows(
            x_ref[...].astype(jnp.float32), quant_bits).astype(xq_ref.dtype)

    o_ref[...] = jnp.dot(xq_ref[...], w_ref[...],
                         preferred_element_type=jnp.float32).astype(o_ref.dtype)


def pallas_oproj_actquant(x2d, wt, *, quant_bits, out_dtype=jnp.float32):
    M, K = x2d.shape
    N = wt.shape[1]
    tm, tn = _fit(LIN_TM, M), _fit(LIN_TN, N)

    kernel = functools.partial(_oproj_actquant_kernel, quant_bits=quant_bits)
    cost = pl.CostEstimate(flops=2 * M * N * K, transcendentals=0,
                           bytes_accessed=2 * (M * K + K * N) + 4 * M * N)
    return pl.pallas_call(
        kernel,
        out_shape=jax.ShapeDtypeStruct((M, N), out_dtype),
        grid_spec=pltpu.PrefetchScalarGridSpec(
            num_scalar_prefetch=0,
            grid=(M // tm, N // tn),
            in_specs=[
                pl.BlockSpec((tm, K), lambda i, j: (i, 0)),
                pl.BlockSpec((K, tn), lambda i, j: (0, j)),
            ],
            out_specs=pl.BlockSpec((tm, tn), lambda i, j: (i, j)),
            scratch_shapes=[pltpu.VMEM((tm, K), jnp.bfloat16)],
        ),
        compiler_params=pltpu.CompilerParams(
            # j must stay sequential per i (xq scratch computed at j == 0).
            dimension_semantics=("parallel", "arbitrary"),
            vmem_limit_bytes=VMEM_LIMIT),
        cost_estimate=cost,
    )(x2d, wt)


# -----------------------------------------------------------------------------
# Rotary tables (plain JAX, tiny)
# -----------------------------------------------------------------------------
def rotary_tables(position_ids, head_dim, theta):
    """position_ids: (B, S) -> cos, sin of shape (B, S, head_dim), f32."""
    inv_freq = 1.0 / (theta ** (jnp.arange(0, head_dim, 2, dtype=jnp.float32)
                                / head_dim))
    freqs = position_ids[..., None].astype(jnp.float32) * inv_freq[None, None, :]
    emb = jnp.concatenate([freqs, freqs], axis=-1)
    return jnp.cos(emb), jnp.sin(emb)


# -----------------------------------------------------------------------------
# QLlamaAttention forward (Pallas)
# -----------------------------------------------------------------------------
def qllama_attention_forward(hidden_states, position_ids, params_t, *,
                             num_heads, num_kv_heads, head_dim, abits,
                             q_kv_cache, rope_theta):
    """params_t: weights pre-transposed and pre-cast to bf16 ONCE at setup.
    Causal additive mask is generated in-kernel (standard LlamaAttention use).
    # TODO(synk): arbitrary attention_mask / KV-cache (past_key_value) paths.
    """
    B, S, hidden = hidden_states.shape
    assert hidden == num_heads * head_dim
    x2d = hidden_states.reshape(B * S, hidden).astype(jnp.bfloat16)

    cos, sin = rotary_tables(position_ids, head_dim, rope_theta)   # (B,S,D) f32
    # Fold the rotate_half sign into sin so the kernel only needs a lane roll.
    sign = jnp.concatenate([-jnp.ones((head_dim // 2,), jnp.float32),
                            jnp.ones((head_dim // 2,), jnp.float32)])
    cos2d = cos.reshape(B * S, head_dim)
    sin2d_signed = (sin * sign).reshape(B * S, head_dim)

    kv_bits = abits if q_kv_cache else None
    scale = 1.0 / math.sqrt(head_dim)

    # Projections with fused epilogues (RoPE / quant / scale), bf16 outputs.
    q = pallas_proj_rope(x2d, params_t["wq_t"], cos2d, sin2d_signed, head_dim,
                         quant_bits=None, scale=scale)
    k = pallas_proj_rope(x2d, params_t["wk_t"], cos2d, sin2d_signed, head_dim,
                         quant_bits=kv_bits, scale=1.0)
    v = pallas_linear(x2d, params_t["wv_t"], quant_bits=kv_bits,
                      quant_group=head_dim)

    q = q.reshape(B, S, num_heads * head_dim)
    k = k.reshape(B, S, num_kv_heads * head_dim)
    v = v.reshape(B, S, num_kv_heads * head_dim)

    # Flash attention (resident K/V, GQA via index_map, no repeat_kv).
    attn_out = pallas_flash_attention(q, k, v, num_heads=num_heads,
                                      num_kv_heads=num_kv_heads,
                                      head_dim=head_dim)

    # reorder_index is None in __init__ -> index_select branch skipped.
    # act_quant is fused into the output projection.
    out = pallas_oproj_actquant(attn_out.reshape(B * S, hidden),
                                params_t["wo_t"], quant_bits=abits,
                                out_dtype=jnp.float32)
    return out.reshape(B, S, hidden)


# -----------------------------------------------------------------------------
# Pure-JAX reference (mirrors the torch forward in f32 math; caller passes
# bf16-rounded activations/weights so the comparison isolates kernel-structure
# error from the bf16 storage policy shared by both paths).
# -----------------------------------------------------------------------------
def reference_forward(hidden_states, attention_mask, position_ids, params, *,
                      num_heads, num_kv_heads, head_dim, abits, q_kv_cache,
                      rope_theta):
    B, S, hidden = hidden_states.shape
    n_groups = num_heads // num_kv_heads
    x2d = hidden_states.reshape(B * S, hidden)
    q = (x2d @ params["wq"].T).reshape(B, S, num_heads, head_dim).transpose(0, 2, 1, 3)
    k = (x2d @ params["wk"].T).reshape(B, S, num_kv_heads, head_dim).transpose(0, 2, 1, 3)
    v = (x2d @ params["wv"].T).reshape(B, S, num_kv_heads, head_dim).transpose(0, 2, 1, 3)
    if q_kv_cache:
        k = _fake_quant_rows(k, abits)
    cos, sin = rotary_tables(position_ids, head_dim, rope_theta)
    cos_b, sin_b = cos[:, None], sin[:, None]

    def rot_half(x):
        h = x.shape[-1] // 2
        return jnp.concatenate([-x[..., h:], x[..., :h]], axis=-1)

    q = q * cos_b + rot_half(q) * sin_b
    k = k * cos_b + rot_half(k) * sin_b

    def repeat_kv(x, n_rep):
        if n_rep == 1:
            return x
        b, hkv, s, d = x.shape
        return jnp.broadcast_to(x[:, :, None], (b, hkv, n_rep, s, d)).reshape(
            b, hkv * n_rep, s, d)

    k = repeat_kv(k, n_groups)
    v = repeat_kv(v, n_groups)
    scores = jnp.einsum("bhqd,bhkd->bhqk", q * (1.0 / math.sqrt(head_dim)), k)
    scores = scores + attention_mask
    attn = jax.nn.softmax(scores.astype(jnp.float32), axis=-1)
    if q_kv_cache:
        v = _fake_quant_rows(v, abits)
    out = jnp.einsum("bhqk,bhkd->bhqd", attn, v)
    out = out.transpose(0, 2, 1, 3).reshape(B, S, hidden)
    out = _fake_quant_rows(out, abits)
    return (out @ params["wo"].T).reshape(B, S, hidden)


# -----------------------------------------------------------------------------
# Main
# -----------------------------------------------------------------------------
if __name__ == "__main__":
    # Small Llama-like config that still exercises: multi-step K accumulation
    # (K=1024, tk=512), multi-head N tiles (2 heads / 256 lanes), the GQA group
    # of 4, multiple q tiles (interior + diagonal kv paths), and the fused
    # act_quant scratch reuse across 4 N tiles.
    B, S = 2, 256
    num_heads, num_kv_heads = 8, 2
    head_dim = 128
    hidden = num_heads * head_dim          # 1024
    abits = 8
    q_kv_cache = True
    rope_theta = 10000.0

    key = jax.random.PRNGKey(0)
    k0, k1, k2, k3, k4 = jax.random.split(key, 5)
    params = {
        "wq": jax.random.normal(k0, (num_heads * head_dim, hidden), jnp.float32) * 0.02,
        "wk": jax.random.normal(k1, (num_kv_heads * head_dim, hidden), jnp.float32) * 0.02,
        "wv": jax.random.normal(k2, (num_kv_heads * head_dim, hidden), jnp.float32) * 0.02,
        "wo": jax.random.normal(k3, (hidden, num_heads * head_dim), jnp.float32) * 0.02,
    }
    # Pre-transpose + pre-cast the torch (out, in) weights ONCE (bf16 MXU feed).
    params_t = {name + "_t": w.T.astype(jnp.bfloat16) for name, w in params.items()}

    hidden_states = jax.random.normal(k4, (B, S, hidden), jnp.float32)
    position_ids = jnp.broadcast_to(jnp.arange(S, dtype=jnp.int32)[None], (B, S))

    out = qllama_attention_forward(
        hidden_states, position_ids, params_t,
        num_heads=num_heads, num_kv_heads=num_kv_heads, head_dim=head_dim,
        abits=abits, q_kv_cache=q_kv_cache, rope_theta=rope_theta)
    out = jax.block_until_ready(out)
    assert out.shape == (B, S, hidden)

    # Reference: f32 math on the same bf16-rounded inputs/weights the kernels
    # consume, with the module's explicit additive causal mask.
    params_ref = {name: w.astype(jnp.bfloat16).astype(jnp.float32)
                  for name, w in params.items()}
    hidden_ref = hidden_states.astype(jnp.bfloat16).astype(jnp.float32)
    causal = jnp.tril(jnp.ones((S, S), dtype=bool))
    attention_mask = jnp.where(causal, 0.0, -1e9).astype(jnp.float32)
    attention_mask = jnp.broadcast_to(attention_mask[None, None], (B, 1, S, S))
    ref = reference_forward(
        hidden_ref, attention_mask, position_ids, params_ref,
        num_heads=num_heads, num_kv_heads=num_kv_heads, head_dim=head_dim,
        abits=abits, q_kv_cache=q_kv_cache, rope_theta=rope_theta)

    # bf16 intermediates + 8-bit fake-quant stages make the check statistical:
    # values landing across a quant-rounding boundary move by a full step.
    err = jnp.abs(out - ref)
    assert float(jnp.mean(err)) < 3e-2, float(jnp.mean(err))
    assert float(jnp.max(err)) < 2e-1, float(jnp.max(err))

    print("KERNEL_OK")
</pallas_src>

<mosaic_0001>
module attributes {stable_mosaic.version = 11 : i64} {
  func.func @_linear_rope_kernel(%arg0: i32, %arg1: i32, %arg2: i32, %arg3: memref<256x512xbf16, #tpu.memory_space<vmem>>, %arg4: memref<512x256xbf16, #tpu.memory_space<vmem>>, %arg5: memref<256x128xf32, #tpu.memory_space<vmem>>, %arg6: memref<256x128xf32, #tpu.memory_space<vmem>>, %arg7: memref<256x256xbf16, #tpu.memory_space<vmem>>, %arg8: memref<256x256xf32, #tpu.memory_space<vmem>>) attributes {dimension_semantics = [#tpu.dimension_semantics<parallel>, #tpu.dimension_semantics<parallel>, #tpu.dimension_semantics<arbitrary>], iteration_bounds = array<i64: 2, 4, 2>, scalar_prefetch = 0 : i64, scratch_operands = 1 : i64, tpu.core_type = #tpu.core_type<tc>, window_params = [{transform_indices = @transform_0, window_bounds = array<i64: 256, 512>}, {transform_indices = @transform_1, window_bounds = array<i64: 512, 256>}, {transform_indices = @transform_2, window_bounds = array<i64: 256, 128>}, {transform_indices = @transform_3, window_bounds = array<i64: 256, 128>}, {transform_indices = @transform_4, window_bounds = array<i64: 256, 256>}]} {
    %c0_i32 = arith.constant 0 : i32
    %0 = arith.cmpi eq, %arg2, %c0_i32 : i32
    %1 = arith.extui %0 : i1 to i32
    %c0_i32_0 = arith.constant 0 : i32
    %2 = arith.cmpi ne, %1, %c0_i32_0 : i32
    scf.if %2 {
      %cst_9 = arith.constant 0.000000e+00 : f32
      %12 = vector.broadcast %cst_9 : f32 to vector<256x256xf32>
      %c0_10 = arith.constant 0 : index
      %c0_11 = arith.constant 0 : index
      %13 = vector.load %arg8[%c0_10, %c0_11] : memref<256x256xf32, #tpu.memory_space<vmem>>, vector<256x256xf32>
      tpu.vector_store %arg8[%c0_10, %c0_11], %12 {strides = array<i32>} : memref<256x256xf32, #tpu.memory_space<vmem>>, vector<256x256xf32>,
    } else {
    }
    %c0 = arith.constant 0 : index
    %c0_1 = arith.constant 0 : index
    %3 = vector.load %arg8[%c0, %c0_1] : memref<256x256xf32, #tpu.memory_space<vmem>>, vector<256x256xf32>
    %c0_2 = arith.constant 0 : index
    %c0_3 = arith.constant 0 : index
    %4 = vector.load %arg3[%c0_2, %c0_3] : memref<256x512xbf16, #tpu.memory_space<vmem>>, vector<256x512xbf16>
    %c0_4 = arith.constant 0 : index
    %c0_5 = arith.constant 0 : index
    %5 = vector.load %arg4[%c0_4, %c0_5] : memref<512x256xbf16, #tpu.memory_space<vmem>>, vector<512x256xbf16>
    %cst = arith.constant dense<0.000000e+00> : vector<256x256xf32>
    %6 = tpu.matmul %4, %5, %cst {dimension_numbers = #tpu.dot_dimension_numbers<[1], [0], [0], [1], [0, 0, 1, 1], [], []>} : vector<256x512xbf16>, vector<512x256xbf16>, vector<256x256xf32> -> vector<256x256xf32>
    %7 = arith.addf %3, %6 : vector<256x256xf32>
    %c0_6 = arith.constant 0 : index
    %c0_7 = arith.constant 0 : index
    %8 = vector.load %arg8[%c0_6, %c0_7] : memref<256x256xf32, #tpu.memory_space<vmem>>, vector<256x256xf32>
    tpu.vector_store %arg8[%c0_6, %c0_7], %7 {strides = array<i32>} : memref<256x256xf32, #tpu.memory_space<vmem>>, vector<256x256xf32>,
    %c1_i32 = arith.constant 1 : i32
    %9 = arith.cmpi eq, %arg2, %c1_i32 : i32
    %10 = arith.extui %9 : i1 to i32
    %c0_i32_8 = arith.constant 0 : i32
    %11 = arith.cmpi ne, %10, %c0_i32_8 : i32
    scf.if %11 {
      %c0_9 = arith.constant 0 : index
      %c0_10 = arith.constant 0 : index
      %12 = vector.load %arg8[%c0_9, %c0_10] : memref<256x256xf32, #tpu.memory_space<vmem>>, vector<256x256xf32>
      %c0_11 = arith.constant 0 : index
      %c0_12 = arith.constant 0 : index
      %13 = vector.load %arg5[%c0_11, %c0_12] : memref<256x128xf32, #tpu.memory_space<vmem>>, vector<256x128xf32>
      %c0_13 = arith.constant 0 : index
      %c0_14 = arith.constant 0 : index
      %14 = vector.load %arg6[%c0_13, %c0_14] : memref<256x128xf32, #tpu.memory_space<vmem>>, vector<256x128xf32>
      %15 = vector.extract_strided_slice %12 {offsets = [0, 0], sizes = [256, 128], strides = [1, 1]} : vector<256x256xf32> to vector<256x128xf32>
      %c64_i32 = arith.constant 64 : i32
      %16 = tpu.dynamic_rotate %15 by %c64_i32 dim 1 : vector<256x128xf32>, i32 -> vector<256x128xf32>
      %17 = arith.mulf %15, %13 : vector<256x128xf32>
      %18 = arith.mulf %16, %14 : vector<256x128xf32>
      %19 = arith.addf %17, %18 : vector<256x128xf32>
      %cst_15 = arith.constant 0.0883883461 : f32
      %20 = vector.broadcast %cst_15 : f32 to vector<256x128xf32>
      %21 = arith.mulf %19, %20 : vector<256x128xf32>
      %22 = arith.truncf %21 : vector<256x128xf32> to vector<256x128xbf16>
      %c0_16 = arith.constant 0 : index
      %c0_17 = arith.constant 0 : index
      %23 = vector.load %arg7[%c0_16, %c0_17] : memref<256x256xbf16, #tpu.memory_space<vmem>>, vector<256x128xbf16>
      tpu.vector_store %arg7[%c0_16, %c0_17], %22 {strides = array<i32>} : memref<256x256xbf16, #tpu.memory_space<vmem>>, vector<256x128xbf16>,
      %24 = vector.extract_strided_slice %12 {offsets = [0, 128], sizes = [256, 128], strides = [1, 1]} : vector<256x256xf32> to vector<256x128xf32>
      %c64_i32_18 = arith.constant 64 : i32
      %25 = tpu.dynamic_rotate %24 by %c64_i32_18 dim 1 : vector<256x128xf32>, i32 -> vector<256x128xf32>
      %26 = arith.mulf %24, %13 : vector<256x128xf32>
      %27 = arith.mulf %25, %14 : vector<256x128xf32>
      %28 = arith.addf %26, %27 : vector<256x128xf32>
      %cst_19 = arith.constant 0.0883883461 : f32
      %29 = vector.broadcast %cst_19 : f32 to vector<256x128xf32>
      %30 = arith.mulf %28, %29 : vector<256x128xf32>
      %31 = arith.truncf %30 : vector<256x128xf32> to vector<256x128xbf16>
      %c0_20 = arith.constant 0 : index
      %c128 = arith.constant 128 : index
      %32 = vector.load %arg7[%c0_20, %c128] : memref<256x256xbf16, #tpu.memory_space<vmem>>, vector<256x128xbf16>
      tpu.vector_store %arg7[%c0_20, %c128], %31 {strides = array<i32>} : memref<256x256xbf16, #tpu.memory_space<vmem>>, vector<256x128xbf16>,
    } else {
    }
    return
  }
  func.func @transform_0(%arg0: i32, %arg1: i32, %arg2: i32) -> (i32, i32) {
    %c0_i32 = arith.constant 0 : i32
    return %arg0, %arg2 : i32, i32
  }
  func.func @transform_1(%arg0: i32, %arg1: i32, %arg2: i32) -> (i32, i32) {
    %c0_i32 = arith.constant 0 : i32
    return %arg2, %arg1 : i32, i32
  }
  func.func @transform_2(%arg0: i32, %arg1: i32, %arg2: i32) -> (i32, i32) {
    %c0_i32 = arith.constant 0 : i32
    %c0_i32_0 = arith.constant 0 : i32
    return %arg0, %c0_i32 : i32, i32
  }
  func.func @transform_3(%arg0: i32, %arg1: i32, %arg2: i32) -> (i32, i32) {
    %c0_i32 = arith.constant 0 : i32
    %c0_i32_0 = arith.constant 0 : i32
    return %arg0, %c0_i32 : i32, i32
  }
  func.func @transform_4(%arg0: i32, %arg1: i32, %arg2: i32) -> (i32, i32) {
    %c0_i32 = arith.constant 0 : i32
    return %arg0, %arg1 : i32, i32
  }
}

</mosaic_0001>

<llo_original>
// kernel: tpu_custom_call.1
$region0: #{tpu_custom_call.1}
  #allocation0 [shape = 'u32[]', space=smem, size = 0x4, offset = 0x4, fixed_abs, tag = 'smem constant byte address 0x4 - core index']
  #allocation1 [shape = 'u32[72,128]{1,0:T(1,128)}', space=vmem, size = 0x9000, scoped, tag = 'internal scratch']
  #allocation2 [shape = 'f32[256,256]{1,0:T(8,128)}', space=vmem, size = 0x40000, scoped, tag = 'scratch operand']
  %s0 = inlined_call_operand.hbm [shape: bf16[512,1024], index: 0, kind: input, shape index: {}]
  %s1 = inlined_call_operand.hbm [shape: bf16[1024,1024], index: 1, kind: input, shape index: {}]
  %s2 = inlined_call_operand.hbm [shape: f32[512,128], index: 2, kind: input, shape index: {}]
  %s3 = inlined_call_operand.hbm [shape: f32[512,128], index: 3, kind: input, shape index: {}]
  %s4 = inlined_call_operand.hbm [shape: bf16[512,1024], index: 4, kind: output, shape index: {}]
  %s5 = sld [smem:[#allocation0]]
  $region73: #{tpu_custom_call.1} parent=0
    _
  %s7 = ssub.s32 1, %s5
  %s8 = scalar_select 0, %s7, %s5
  $region1: #{tpu_custom_call.1} parent=0
    #allocation3 [shape = 'u8[524288]{0}', space=vmem, size = 0x80000, scoped, tag = 'input window, operand 0']
    #allocation4 [shape = 's32[2]{0}', space=sflag, size = 0x8, scoped, tag = 'scoped memory for tpu_custom_call.1']
    #allocation5 [shape = 's32[2]{0}', space=sflag, size = 0x8, scoped, tag = 'scoped memory for tpu_custom_call.1']
    #allocation6 [shape = 'u8[524288]{0}', space=vmem, size = 0x80000, scoped, tag = 'input window, operand 1']
    #allocation7 [shape = 's32[2]{0}', space=sflag, size = 0x8, scoped, tag = 'scoped memory for tpu_custom_call.1']
    #allocation8 [shape = 'u8[262144]{0}', space=vmem, size = 0x40000, scoped, tag = 'input window, operand 2']
    #allocation9 [shape = 'u8[262144]{0}', space=vmem, size = 0x40000, scoped, tag = 'input window, operand 3']
    #allocation10 [shape = 's32[2]{0}', space=sflag, size = 0x8, scoped, tag = 'scoped memory for tpu_custom_call.1']
    #allocation11 [shape = 'u8[262144]{0}', space=vmem, size = 0x40000, scoped, tag = 'output window, operand 0']
    %9 = vsyncpa [#allocation4], 0
    %s10 = scalar_lea.sflag [#allocation4], 1
    %11 = vsyncpa %s10, 0
    %12 = vsyncpa [#allocation7], 0
    %s13 = scalar_lea.sflag [#allocation7], 1
    %14 = vsyncpa %s13, 0
    %15 = vsyncpa [#allocation10], 0
    %s16 = scalar_lea.sflag [#allocation10], 1
    %17 = vsyncpa %s16, 0
    %18 = vsyncpa [#allocation5], 0
    %s19 = scalar_lea.sflag [#allocation5], 1
    %20 = vsyncpa %s19, 0
    loop: start=0, step=1, limit=18
    $region2: #{tpu_custom_call.1} parent=1 // loop_pre_header
      _
    $region3: #{tpu_custom_call.1} parent=1 // loop_header
      %s22 = sphi 0, %s26
      %p23 = scmp.ge.s32.totalorder %s22, 18
      %s29 = sphi 0, %s48
      %s30 = sphi 0, %s44
      %s31 = sphi 0, %s40
      %s32 = sphi 0, %s29
      %s33 = sphi 0, %s30
      %s34 = sphi 0, %s31
      %s35 = sphi 0, %s32
      %s36 = sphi 0, %s33
      %s37 = sphi 0, %s34
      %s53 = sphi 0, %s55
      %s56 = sphi 0, %s53
      %s57 = sphi 0, %s56
      %s73 = sphi 0, %s57
      %s81 = sphi 0, %s83
      %s84 = sphi 0, %s81
      %s85 = sphi 0, %s84
      %s101 = sphi 0, %s85
      %s107 = sphi 0, %s109
      %s110 = sphi 0, %s107
      %s111 = sphi 0, %s110
      %s127 = sphi 0, %s111
      %s133 = sphi 0, %s135
      %s136 = sphi 0, %s133
      %s137 = sphi 0, %s136
      %s153 = sphi 0, %s137
      %s161 = sphi 0, %s163
      %s164 = sphi 0, %s161
      %s165 = sphi 0, %s164
      %s181 = sphi 0, %s165
    $region4: #{tpu_custom_call.1} parent=1 // loop_header_branch
      %25 = sbr.rel (%p23) target = $region8
    $region5: #{tpu_custom_call.1} parent=1 // loop_body
      %s27 = ssub.s32 %s22, 1
      %s28 = ssub.s32 %s22, 2
      %s38 = sadd.s32 1, %s31
      %p39 = scmp.ge.s32.totalorder %s38, 2
      %s40 = scalar_select %p39, 0, %s38
      %s41 = sadd.s32 1, %s30
      %s42 = scalar_select %p39, %s41, %s30
      %p43 = scmp.ge.s32.totalorder %s42, 4
      %s44 = scalar_select %p43, 0, %s42
      %s45 = sadd.s32 1, %s29
      %s46 = scalar_select %p43, %s45, %s29
      %p47 = scmp.ge.s32.totalorder %s46, 2
      %s48 = scalar_select %p47, 0, %s46
      %s49 = ssub.s32 %s29, %s48
      %s50 = ssub.s32 %s31, %s40
      %s51 = sor.u32 %s49, %s50
      %p52 = scmp.eq.s32.totalorder %s51, 0
      %s54 = sadd.s32 %s53, 1
      %s55 = scalar_select %p52, %s53, %s54
      %p58 = pneg %p52
      %p59 = scmp.eq.s32.totalorder %s22, 15
      %p60 = por %p58, %p59
      %p61 = scmp.ne.s32.totalorder %s53, %s56
      %p62 = scmp.eq.s32.totalorder %s22, 0
      %p63 = por %p61, %p62
      %p64 = scmp.ne.s32.totalorder %s53, %s56
      %p65 = scmp.eq.s32.totalorder %s27, 15
      %p66 = por %p64, %p65
      %p67 = scmp.ne.s32.totalorder %s56, %s57
      %p68 = scmp.eq.s32.totalorder %s27, 0
      %p69 = por %p67, %p68
      %p70 = scmp.ne.s32.totalorder %s56, %s57
      %p71 = scmp.eq.s32.totalorder %s28, 15
      %p72 = por %p70, %p71
      %p74 = scmp.ne.s32.totalorder %s57, %s73
      %p75 = scmp.eq.s32.totalorder %s28, 0
      %p76 = por %p74, %p75
      %s77 = ssub.s32 %s31, %s40
      %s78 = ssub.s32 %s30, %s44
      %s79 = sor.u32 %s77, %s78
      %p80 = scmp.eq.s32.totalorder %s79, 0
      %s82 = sadd.s32 %s81, 1
      %s83 = scalar_select %p80, %s81, %s82
      %p86 = pneg %p80
      %p87 = scmp.eq.s32.totalorder %s22, 15
      %p88 = por %p86, %p87
      %p89 = scmp.ne.s32.totalorder %s81, %s84
      %p90 = scmp.eq.s32.totalorder %s22, 0
      %p91 = por %p89, %p90
      %p92 = scmp.ne.s32.totalorder %s81, %s84
      %p93 = scmp.eq.s32.totalorder %s27, 15
      %p94 = por %p92, %p93
      %p95 = scmp.ne.s32.totalorder %s84, %s85
      %p96 = scmp.eq.s32.totalorder %s27, 0
      %p97 = por %p95, %p96
      %p98 = scmp.ne.s32.totalorder %s84, %s85
      %p99 = scmp.eq.s32.totalorder %s28, 15
      %p100 = por %p98, %p99
      %p102 = scmp.ne.s32.totalorder %s85, %s101
      %p103 = scmp.eq.s32.totalorder %s28, 0
      %p104 = por %p102, %p103
      %s105 = ssub.s32 %s29, %s48
      %p106 = scmp.eq.s32.totalorder %s105, 0
      %s108 = sadd.s32 %s107, 1
      %s109 = scalar_select %p106, %s107, %s108
      %p112 = pneg %p106
      %p113 = scmp.eq.s32.totalorder %s22, 15
      %p114 = por %p112, %p113
      %p115 = scmp.ne.s32.totalorder %s107, %s110
      %p116 = scmp.eq.s32.totalorder %s22, 0
      %p117 = por %p115, %p116
      %p118 = scmp.ne.s32.totalorder %s107, %s110
      %p119 = scmp.eq.s32.totalorder %s27, 15
      %p120 = por %p118, %p119
      %p121 = scmp.ne.s32.totalorder %s110, %s111
      %p122 = scmp.eq.s32.totalorder %s27, 0
      %p123 = por %p121, %p122
      %p124 = scmp.ne.s32.totalorder %s110, %s111
      %p125 = scmp.eq.s32.totalorder %s28, 15
      %p126 = por %p124, %p125
      %p128 = scmp.ne.s32.totalorder %s111, %s127
      %p129 = scmp.eq.s32.totalorder %s28, 0
      %p130 = por %p128, %p129
      %s131 = ssub.s32 %s29, %s48
      %p132 = scmp.eq.s32.totalorder %s131, 0
      %s134 = sadd.s32 %s133, 1
      %s135 = scalar_select %p132, %s133, %s134
      %p138 = pneg %p132
      %p139 = scmp.eq.s32.totalorder %s22, 15
      %p140 = por %p138, %p139
      %p141 = scmp.ne.s32.totalorder %s133, %s136
      %p142 = scmp.eq.s32.totalorder %s22, 0
      %p143 = por %p141, %p142
      %p144 = scmp.ne.s32.totalorder %s133, %s136
      %p145 = scmp.eq.s32.totalorder %s27, 15
      %p146 = por %p144, %p145
      %p147 = scmp.ne.s32.totalorder %s136, %s137
      %p148 = scmp.eq.s32.totalorder %s27, 0
      %p149 = por %p147, %p148
      %p150 = scmp.ne.s32.totalorder %s136, %s137
      %p151 = scmp.eq.s32.totalorder %s28, 15
      %p152 = por %p150, %p151
      %p154 = scmp.ne.s32.totalorder %s137, %s153
      %p155 = scmp.eq.s32.totalorder %s28, 0
      %p156 = por %p154, %p155
      %s157 = ssub.s32 %s29, %s48
      %s158 = ssub.s32 %s30, %s44
      %s159 = sor.u32 %s157, %s158
      %p160 = scmp.eq.s32.totalorder %s159, 0
      %s162 = sadd.s32 %s161, 1
      %s163 = scalar_select %p160, %s161, %s162
      %p166 = pneg %p160
      %p167 = scmp.eq.s32.totalorder %s22, 15
      %p168 = por %p166, %p167
      %p169 = scmp.ne.s32.totalorder %s161, %s164
      %p170 = scmp.eq.s32.totalorder %s22, 0
      %p171 = por %p169, %p170
      %p172 = scmp.ne.s32.totalorder %s161, %s164
      %p173 = scmp.eq.s32.totalorder %s27, 15
      %p174 = por %p172, %p173
      %p175 = scmp.ne.s32.totalorder %s164, %s165
      %p176 = scmp.eq.s32.totalorder %s27, 0
      %p177 = por %p175, %p176
      %p178 = scmp.ne.s32.totalorder %s164, %s165
      %p179 = scmp.eq.s32.totalorder %s28, 15
      %p180 = por %p178, %p179
      %p182 = scmp.ne.s32.totalorder %s165, %s181
      %p183 = scmp.eq.s32.totalorder %s28, 0
      %p184 = por %p182, %p183
      %p185 = scmp.le.s32.totalorder 1, %s22
      %p186 = scmp.lt.s32.totalorder %s22, 17
      %p187 = pnand %p185, %p186
      %p188 = pneg %p187
      // Predicated region
      $region9: #{tpu_custom_call.1} parent=5 // pred_check
        _
      $region10: #{tpu_custom_call.1} parent=5 // pred_check_branch
        %190 = sbr.rel (%p187) target = $region12
      $region11: #{tpu_custom_call.1} parent=5 // pred_region
        %s191 = ssub.s32 %s22, 1
      $region12: #{tpu_custom_call.1} parent=5 // pred_fallthru
        _
      %p192 = scmp.lt.s32.totalorder %s22, 16
      // Predicated region
      $region13: #{tpu_custom_call.1} parent=5 // pred_check
        %p193 = pneg %p192
      $region14: #{tpu_custom_call.1} parent=5 // pred_check_branch
        %195 = sbr.rel (%p193) target = $region16
      $region15: #{tpu_custom_call.1} parent=5 // pred_region
        // Predicated region
        $region17: #{tpu_custom_call.1} parent=15 // pred_check
          %p196 = pneg %p63
        $region18: #{tpu_custom_call.1} parent=15 // pred_check_branch
          %198 = sbr.rel (%p196) target = $region20
        $region19: #{tpu_custom_call.1} parent=15 // pred_region
          %s199 = sand.u32 %s53, 1
          %s200 = scalar_lea.sflag [#allocation4], %s199
          %s201 = sand.u32 %s53, 1
          %s202 = smul.addr %s201, 512
          %s203 = scalar_lea.vmem [#allocation3], %s202
          %s204 = smul.u32 32, %s29
          %s205 = smul.u32 4, %s31
          %207 = vsyncadd %s200, 0
          %s208 = smul.addr %s204, 8
          %s209 = sadd.s32 %s205, %s208
          %s210 = smul.addr %s209, 4
          %s211 = scalar_lea.hbm %s0, %s210
          %s212 = sshll.u32 %s211, 4
          %s213 = int_to_ptr.hbm [resolvable:$true] %s212
          %s214 = sshll.u32 %s203, 4
          %s215 = int_to_ptr.vmem [resolvable:$true] %s214
          %220 = dma.hbm_to_vmem [thread:$0]  %s213, 8192, %s215, %s200, 512, 256, 16
        $region20: #{tpu_custom_call.1} parent=15 // pred_fallthru
          _
        // Predicated region
        $region21: #{tpu_custom_call.1} parent=15 // pred_check
          %p221 = pneg %p91
        $region22: #{tpu_custom_call.1} parent=15 // pred_check_branch
          %223 = sbr.rel (%p221) target = $region24
        $region23: #{tpu_custom_call.1} parent=15 // pred_region
          %s224 = sand.u32 %s22, 1
          %s225 = scalar_lea.sflag [#allocation7], %s224
          %s226 = sand.u32 %s81, 1
          %s227 = smul.addr %s226, 512
          %s228 = scalar_lea.vmem [#allocation6], %s227
          %s229 = smul.u32 64, %s31
          %s230 = smul.u32 2, %s30
          %232 = vsyncadd %s225, 0
          %s233 = smul.addr %s229, 8
          %s234 = sadd.s32 %s230, %s233
          %s235 = smul.addr %s234, 4
          %s236 = scalar_lea.hbm %s1, %s235
          %s237 = sshll.u32 %s236, 4
          %s238 = int_to_ptr.hbm [resolvable:$true] %s237
          %s239 = sshll.u32 %s228, 4
          %s240 = int_to_ptr.vmem [resolvable:$true] %s239
          %245 = dma.hbm_to_vmem [thread:$0]  %s238, 8192, %s240, %s225, 512, 128, 8
        $region24: #{tpu_custom_call.1} parent=15 // pred_fallthru
          _
        // Predicated region
        $region25: #{tpu_custom_call.1} parent=15 // pred_check
          %p246 = pneg %p117
        $region26: #{tpu_custom_call.1} parent=15 // pred_check_branch
          %248 = sbr.rel (%p246) target = $region28
        $region27: #{tpu_custom_call.1} parent=15 // pred_region
          %s249 = sand.u32 %s22, 1
          %s250 = scalar_lea.sflag [#allocation7], %s249
          %s251 = sand.u32 %s107, 1
          %s252 = smul.addr %s251, 256
          %s253 = scalar_lea.vmem [#allocation8], %s252
          %s254 = smul.u32 32, %s29
          %256 = vsyncadd %s250, 0
          %s257 = smul.addr %s254, 8
          %s258 = scalar_lea.hbm %s2, %s257
          %s259 = sshll.u32 %s258, 4
          %s260 = int_to_ptr.hbm [resolvable:$true] %s259
          %s261 = sshll.u32 %s253, 4
          %s262 = int_to_ptr.vmem [resolvable:$true] %s261
          %267 = dma.hbm_to_vmem [thread:$0]  %s260, 4096, %s262, %s250, 128, 128, 8
        $region28: #{tpu_custom_call.1} parent=15 // pred_fallthru
          _
        // Predicated region
        $region29: #{tpu_custom_call.1} parent=15 // pred_check
          %p268 = pneg %p143
        $region30: #{tpu_custom_call.1} parent=15 // pred_check_branch
          %270 = sbr.rel (%p268) target = $region32
        $region31: #{tpu_custom_call.1} parent=15 // pred_region
          %s271 = sand.u32 %s133, 1
          %s272 = scalar_lea.sflag [#allocation10], %s271
          %s273 = sand.u32 %s133, 1
          %s274 = smul.addr %s273, 256
          %s275 = scalar_lea.vmem [#allocation9], %s274
          %s276 = smul.u32 32, %s29
          %278 = vsyncadd %s272, 0
          %s279 = smul.addr %s276, 8
          %s280 = scalar_lea.hbm %s3, %s279
          %s281 = sshll.u32 %s280, 4
          %s282 = int_to_ptr.hbm [resolvable:$true] %s281
          %s283 = sshll.u32 %s275, 4
          %s284 = int_to_ptr.vmem [resolvable:$true] %s283
          %289 = dma.hbm_to_vmem [thread:$0]  %s282, 4096, %s284, %s272, 128, 128, 8
        $region32: #{tpu_custom_call.1} parent=15 // pred_fallthru
          _
      $region16: #{tpu_custom_call.1} parent=5 // pred_fallthru
        _
      %p290 = scmp.le.s32.totalorder 1, %s22
      %p291 = scmp.lt.s32.totalorder %s22, 17
      %p292 = pnand %p290, %p291
      %p293 = pneg %p292
      // Predicated region
      $region33: #{tpu_custom_call.1} parent=5 // pred_check
        _
      $region34: #{tpu_custom_call.1} parent=5 // pred_check_branch
        %295 = sbr.rel (%p292) target = $region36
      $region35: #{tpu_custom_call.1} parent=5 // pred_region
        %s296 = ssub.s32 %s22, 1
        %s297 = sand.u32 %s56, 1
        %s298 = scalar_lea.sflag [#allocation4], %s297
        %s299 = sand.u32 %s56, 1
        %s300 = smul.addr %s299, 512
        %s301 = scalar_lea.vmem [#allocation3], %s300
        // Predicated region
        $region37: #{tpu_custom_call.1} parent=35 // pred_check
          %p302 = pneg %p69
        $region38: #{tpu_custom_call.1} parent=35 // pred_check_branch
          %304 = sbr.rel (%p302) target = $region40
        $region39: #{tpu_custom_call.1} parent=35 // pred_region
          %306 = dma.done %s298, 8192
        $region40: #{tpu_custom_call.1} parent=35 // pred_fallthru
          _
        %s307 = sand.u32 %s27, 1
        %s308 = scalar_lea.sflag [#allocation7], %s307
        %s309 = sand.u32 %s84, 1
        %s310 = smul.addr %s309, 512
        %s311 = scalar_lea.vmem [#allocation6], %s310
        // Predicated region
        $region41: #{tpu_custom_call.1} parent=35 // pred_check
          %p312 = pneg %p97
        $region42: #{tpu_custom_call.1} parent=35 // pred_check_branch
          %314 = sbr.rel (%p312) target = $region44
        $region43: #{tpu_custom_call.1} parent=35 // pred_region
          %316 = dma.done %s308, 8192
        $region44: #{tpu_custom_call.1} parent=35 // pred_fallthru
          _
        %s317 = sand.u32 %s27, 1
        %s318 = scalar_lea.sflag [#allocation7], %s317
        %s319 = sand.u32 %s110, 1
        %s320 = smul.addr %s319, 256
        %s321 = scalar_lea.vmem [#allocation8], %s320
        // Predicated region
        $region45: #{tpu_custom_call.1} parent=35 // pred_check
          %p322 = pneg %p123
        $region46: #{tpu_custom_call.1} parent=35 // pred_check_branch
          %324 = sbr.rel (%p322) target = $region48
        $region47: #{tpu_custom_call.1} parent=35 // pred_region
          %326 = dma.done %s318, 4096
        $region48: #{tpu_custom_call.1} parent=35 // pred_fallthru
          _
        %s327 = sand.u32 %s136, 1
        %s328 = scalar_lea.sflag [#allocation10], %s327
        %s329 = sand.u32 %s136, 1
        %s330 = smul.addr %s329, 256
        %s331 = scalar_lea.vmem [#allocation9], %s330
        // Predicated region
        $region49: #{tpu_custom_call.1} parent=35 // pred_check
          %p332 = pneg %p149
        $region50: #{tpu_custom_call.1} parent=35 // pred_check_branch
          %334 = sbr.rel (%p332) target = $region52
        $region51: #{tpu_custom_call.1} parent=35 // pred_region
          %336 = dma.done %s328, 4096
        $region52: #{tpu_custom_call.1} parent=35 // pred_fallthru
          _
        %s337 = sand.u32 %s56, 1
        %s338 = scalar_lea.sflag [#allocation4], %s337
        %s339 = sand.u32 %s56, 1
        %s340 = smul.addr %s339, 512
        %s341 = scalar_lea.vmem [#allocation3], %s340
        %p342 = pneg %p69
        %p343 = pneg %p66
        %s344 = sand.u32 %s27, 1
        %s345 = scalar_lea.sflag [#allocation7], %s344
        %s346 = sand.u32 %s84, 1
        %s347 = smul.addr %s346, 512
        %s348 = scalar_lea.vmem [#allocation6], %s347
        %p349 = pneg %p97
        %p350 = pneg %p94
        %s351 = sand.u32 %s27, 1
        %s352 = scalar_lea.sflag [#allocation7], %s351
        %s353 = sand.u32 %s110, 1
        %s354 = smul.addr %s353, 256
        %s355 = scalar_lea.vmem [#allocation8], %s354
        %p356 = pneg %p123
        %p357 = pneg %p120
        %s358 = sand.u32 %s136, 1
        %s359 = scalar_lea.sflag [#allocation10], %s358
        %s360 = sand.u32 %s136, 1
        %s361 = smul.addr %s360, 256
        %s362 = scalar_lea.vmem [#allocation9], %s361
        %p363 = pneg %p149
        %p364 = pneg %p146
        %p365 = pneg %p177
        %p366 = pneg %p174
        %s367 = sand.u32 %s164, 1
        %s368 = scalar_lea.sflag [#allocation5], %s367
        %s369 = sand.u32 %s164, 1
        %s370 = smul.addr %s369, 256
        %s371 = scalar_lea.vmem [#allocation11], %s370
        %s372 = smul.u32 32, %s32
        %s373 = smul.u32 4, %s34
        %s374 = smul.u32 64, %s34
        %s375 = smul.u32 2, %s33
        %s376 = smul.u32 32, %s32
        %s377 = smul.u32 32, %s32
        %s378 = smul.u32 32, %s32
        %s379 = smul.u32 2, %s33
        %p380 = scmp.eq.s32.totalorder %s34, 0
        // Predicated region
        $region53: #{tpu_custom_call.1} parent=35 // pred_check
          %p381 = pneg %p380
        $region54: #{tpu_custom_call.1} parent=35 // pred_check_branch
          %383 = sbr.rel (%p381) target = $region56
        $region55: #{tpu_custom_call.1} parent=35 // pred_region
          %384 = vst [vmem:[#allocation2] sm:$0xff] 0.0
          %385 = vst [vmem:[#allocation2 + $0x8] sm:$0xff] 0.0
          %386 = vst [vmem:[#allocation2 + $0x10] sm:$0xff] 0.0
          %387 = vst [vmem:[#allocation2 + $0x18] sm:$0xff] 0.0
          %388 = vst [vmem:[#allocation2 + $0x20] sm:$0xff] 0.0
          %389 = vst [vmem:[#allocation2 + $0x28] sm:$0xff] 0.0
          %390 = vst [vmem:[#allocation2 + $0x30] sm:$0xff] 0.0
          %391 = vst [vmem:[#allocation2 + $0x38] sm:$0xff] 0.0
          %392 = vst [vmem:[#allocation2 + $0x40] sm:$0xff] 0.0
          %393 = vst [vmem:[#allocation2 + $0x48] sm:$0xff] 0.0
          %394 = vst [vmem:[#allocation2 + $0x50] sm:$0xff] 0.0
          %395 = vst [vmem:[#allocation2 + $0x58] sm:$0xff] 0.0
          %396 = vst [vmem:[#allocation2 + $0x60] sm:$0xff] 0.0
          %397 = vst [vmem:[#allocation2 + $0x68] sm:$0xff] 0.0
          %398 = vst [vmem:[#allocation2 + $0x70] sm:$0xff] 0.0
          %399 = vst [vmem:[#allocation2 + $0x78] sm:$0xff] 0.0
          %400 = vst [vmem:[#allocation2 + $0x80] sm:$0xff] 0.0
          %401 = vst [vmem:[#allocation2 + $0x88] sm:$0xff] 0.0
          %402 = vst [vmem:[#allocation2 + $0x90] sm:$0xff] 0.0
          %403 = vst [vmem:[#allocation2 + $0x98] sm:$0xff] 0.0
          %404 = vst [vmem:[#allocation2 + $0xa0] sm:$0xff] 0.0
          %405 = vst [vmem:[#allocation2 + $0xa8] sm:$0xff] 0.0
          %406 = vst [vmem:[#allocation2 + $0xb0] sm:$0xff] 0.0
          %407 = vst [vmem:[#allocation2 + $0xb8] sm:$0xff] 0.0
          %408 = vst [vmem:[#allocation2 + $0xc0] sm:$0xff] 0.0
          %409 = vst [vmem:[#allocation2 + $0xc8] sm:$0xff] 0.0
          %410 = vst [vmem:[#allocation2 + $0xd0] sm:$0xff] 0.0
          %411 = vst [vmem:[#allocation2 + $0xd8] sm:$0xff] 0.0
          %412 = vst [vmem:[#allocation2 + $0xe0] sm:$0xff] 0.0
          %413 = vst [vmem:[#allocation2 + $0xe8] sm:$0xff] 0.0
          %414 = vst [vmem:[#allocation2 + $0xf0] sm:$0xff] 0.0
          %415 = vst [vmem:[#allocation2 + $0xf8] sm:$0xff] 0.0
          %416 = vst [vmem:[#allocation2 + $0x100] sm:$0xff] 0.0
          %417 = vst [vmem:[#allocation2 + $0x108] sm:$0xff] 0.0
          %418 = vst [vmem:[#allocation2 + $0x110] sm:$0xff] 0.0
          %419 = vst [vmem:[#allocation2 + $0x118] sm:$0xff] 0.0
          %420 = vst [vmem:[#allocation2 + $0x120] sm:$0xff] 0.0
          %421 = vst [vmem:[#allocation2 + $0x128] sm:$0xff] 0.0
          %422 = vst [vmem:[#allocation2 + $0x130] sm:$0xff] 0.0
          %423 = vst [vmem:[#allocation2 + $0x138] sm:$0xff] 0.0
          %424 = vst [vmem:[#allocation2 + $0x140] sm:$0xff] 0.0
          %425 = vst [vmem:[#allocation2 + $0x148] sm:$0xff] 0.0
          %426 = vst [vmem:[#allocation2 + $0x150] sm:$0xff] 0.0
          %427 = vst [vmem:[#allocation2 + $0x158] sm:$0xff] 0.0
          %428 = vst [vmem:[#allocation2 + $0x160] sm:$0xff] 0.0
          %429 = vst [vmem:[#allocation2 + $0x168] sm:$0xff] 0.0
          %430 = vst [vmem:[#allocation2 + $0x170] sm:$0xff] 0.0
          %431 = vst [vmem:[#allocation2 + $0x178] sm:$0xff] 0.0
          %432 = vst [vmem:[#allocation2 + $0x180] sm:$0xff] 0.0
          %433 = vst [vmem:[#allocation2 + $0x188] sm:$0xff] 0.0
          %434 = vst [vmem:[#allocation2 + $0x190] sm:$0xff] 0.0
          %435 = vst [vmem:[#allocation2 + $0x198] sm:$0xff] 0.0
          %436 = vst [vmem:[#allocation2 + $0x1a0] sm:$0xff] 0.0
          %437 = vst [vmem:[#allocation2 + $0x1a8] sm:$0xff] 0.0
          %438 = vst [vmem:[#allocation2 + $0x1b0] sm:$0xff] 0.0
          %439 = vst [vmem:[#allocation2 + $0x1b8] sm:$0xff] 0.0
          %440 = vst [vmem:[#allocation2 + $0x1c0] sm:$0xff] 0.0
          %441 = vst [vmem:[#allocation2 + $0x1c8] sm:$0xff] 0.0
          %442 = vst [vmem:[#allocation2 + $0x1d0] sm:$0xff] 0.0
          %443 = vst [vmem:[#allocation2 + $0x1d8] sm:$0xff] 0.0
          %444 = vst [vmem:[#allocation2 + $0x1e0] sm:$0xff] 0.0
          %445 = vst [vmem:[#allocation2 + $0x1e8] sm:$0xff] 0.0
          %446 = vst [vmem:[#allocation2 + $0x1f0] sm:$0xff] 0.0
          %447 = vst [vmem:[#allocation2 + $0x1f8] sm:$0xff] 0.0
        $region56: #{tpu_custom_call.1} parent=35 // pred_fallthru
          _
        %v448 = vld [vmem:[#allocation2] sm:$0xff]
        %v449 = vld [vmem:[#allocation2 + $0x8] sm:$0xff]
        %v450 = vld [vmem:[#allocation2 + $0x10] sm:$0xff]
        %v451 = vld [vmem:[#allocation2 + $0x18] sm:$0xff]
        %v452 = vld [vmem:[#allocation2 + $0x20] sm:$0xff]
        %v453 = vld [vmem:[#allocation2 + $0x28] sm:$0xff]
        %v454 = vld [vmem:[#allocation2 + $0x30] sm:$0xff]
        %v455 = vld [vmem:[#allocation2 + $0x38] sm:$0xff]
        %v456 = vld [vmem:[#allocation2 + $0x40] sm:$0xff]
        %v457 = vld [vmem:[#allocation2 + $0x48] sm:$0xff]
        %v458 = vld [vmem:[#allocation2 + $0x50] sm:$0xff]
        %v459 = vld [vmem:[#allocation2 + $0x58] sm:$0xff]
        %v460 = vld [vmem:[#allocation2 + $0x60] sm:$0xff]
        %v461 = vld [vmem:[#allocation2 + $0x68] sm:$0xff]
        %v462 = vld [vmem:[#allocation2 + $0x70] sm:$0xff]
        %v463 = vld [vmem:[#allocation2 + $0x78] sm:$0xff]
        %v464 = vld [vmem:[#allocation2 + $0x80] sm:$0xff]
        %v465 = vld [vmem:[#allocation2 + $0x88] sm:$0xff]
        %v466 = vld [vmem:[#allocation2 + $0x90] sm:$0xff]
        %v467 = vld [vmem:[#allocation2 + $0x98] sm:$0xff]
        %v468 = vld [vmem:[#allocation2 + $0xa0] sm:$0xff]
        %v469 = vld [vmem:[#allocation2 + $0xa8] sm:$0xff]
        %v470 = vld [vmem:[#allocation2 + $0xb0] sm:$0xff]
        %v471 = vld [vmem:[#allocation2 + $0xb8] sm:$0xff]
        %v472 = vld [vmem:[#allocation2 + $0xc0] sm:$0xff]
        %v473 = vld [vmem:[#allocation2 + $0xc8] sm:$0xff]
        %v474 = vld [vmem:[#allocation2 + $0xd0] sm:$0xff]
        %v475 = vld [vmem:[#allocation2 + $0xd8] sm:$0xff]
        %v476 = vld [vmem:[#allocation2 + $0xe0] sm:$0xff]
        %v477 = vld [vmem:[#allocation2 + $0xe8] sm:$0xff]
        %v478 = vld [vmem:[#allocation2 + $0xf0] sm:$0xff]
        %v479 = vld [vmem:[#allocation2 + $0xf8] sm:$0xff]
        %v480 = vld [vmem:[#allocation2 + $0x100] sm:$0xff]
        %v481 = vld [vmem:[#allocation2 + $0x108] sm:$0xff]
        %v482 = vld [vmem:[#allocation2 + $0x110] sm:$0xff]
        %v483 = vld [vmem:[#allocation2 + $0x118] sm:$0xff]
        %v484 = vld [vmem:[#allocation2 + $0x120] sm:$0xff]
        %v485 = vld [vmem:[#allocation2 + $0x128] sm:$0xff]
        %v486 = vld [vmem:[#allocation2 + $0x130] sm:$0xff]
        %v487 = vld [vmem:[#allocation2 + $0x138] sm:$0xff]
        %v488 = vld [vmem:[#allocation2 + $0x140] sm:$0xff]
        %v489 = vld [vmem:[#allocation2 + $0x148] sm:$0xff]
        %v490 = vld [vmem:[#allocation2 + $0x150] sm:$0xff]
        %v491 = vld [vmem:[#allocation2 + $0x158] sm:$0xff]
        %v492 = vld [vmem:[#allocation2 + $0x160] sm:$0xff]
        %v493 = vld [vmem:[#allocation2 + $0x168] sm:$0xff]
        %v494 = vld [vmem:[#allocation2 + $0x170] sm:$0xff]
        %v495 = vld [vmem:[#allocation2 + $0x178] sm:$0xff]
        %v496 = vld [vmem:[#allocation2 + $0x180] sm:$0xff]
        %v497 = vld [vmem:[#allocation2 + $0x188] sm:$0xff]
        %v498 = vld [vmem:[#allocation2 + $0x190] sm:$0xff]
        %v499 = vld [vmem:[#allocation2 + $0x198] sm:$0xff]
        %v500 = vld [vmem:[#allocation2 + $0x1a0] sm:$0xff]
        %v501 = vld [vmem:[#allocation2 + $0x1a8] sm:$0xff]
        %v502 = vld [vmem:[#allocation2 + $0x1b0] sm:$0xff]
        %v503 = vld [vmem:[#allocation2 + $0x1b8] sm:$0xff]
        %v504 = vld [vmem:[#allocation2 + $0x1c0] sm:$0xff]
        %v505 = vld [vmem:[#allocation2 + $0x1c8] sm:$0xff]
        %v506 = vld [vmem:[#allocation2 + $0x1d0] sm:$0xff]
        %v507 = vld [vmem:[#allocation2 + $0x1d8] sm:$0xff]
        %v508 = vld [vmem:[#allocation2 + $0x1e0] sm:$0xff]
        %v509 = vld [vmem:[#allocation2 + $0x1e8] sm:$0xff]
        %v510 = vld [vmem:[#allocation2 + $0x1f0] sm:$0xff]
        %v511 = vld [vmem:[#allocation2 + $0x1f8] sm:$0xff]
        %v512 = vld [vmem:[%s301] sm:$0xff]
        %v513 = vld [vmem:[%s301 + $0x8] sm:$0xff]
        %v514 = vld [vmem:[%s301 + $0x10] sm:$0xff]
        %v515 = vld [vmem:[%s301 + $0x18] sm:$0xff]
        %v516 = vld [vmem:[%s301 + $0x20] sm:$0xff]
        %v517 = vld [vmem:[%s301 + $0x28] sm:$0xff]
        %v518 = vld [vmem:[%s301 + $0x30] sm:$0xff]
        %v519 = vld [vmem:[%s301 + $0x38] sm:$0xff]
        %v520 = vld [vmem:[%s301 + $0x40] sm:$0xff]
        %v521 = vld [vmem:[%s301 + $0x48] sm:$0xff]
        %v522 = vld [vmem:[%s301 + $0x50] sm:$0xff]
        %v523 = vld [vmem:[%s301 + $0x58] sm:$0xff]
        %v524 = vld [vmem:[%s301 + $0x60] sm:$0xff]
        %v525 = vld [vmem:[%s301 + $0x68] sm:$0xff]
        %v526 = vld [vmem:[%s301 + $0x70] sm:$0xff]
        %v527 = vld [vmem:[%s301 + $0x78] sm:$0xff]
        %v528 = vld [vmem:[%s301 + $0x80] sm:$0xff]
        %v529 = vld [vmem:[%s301 + $0x88] sm:$0xff]
        %v530 = vld [vmem:[%s301 + $0x90] sm:$0xff]
        %v531 = vld [vmem:[%s301 + $0x98] sm:$0xff]
        %v532 = vld [vmem:[%s301 + $0xa0] sm:$0xff]
        %v533 = vld [vmem:[%s301 + $0xa8] sm:$0xff]
        %v534 = vld [vmem:[%s301 + $0xb0] sm:$0xff]
        %v535 = vld [vmem:[%s301 + $0xb8] sm:$0xff]
        %v536 = vld [vmem:[%s301 + $0xc0] sm:$0xff]
        %v537 = vld [vmem:[%s301 + $0xc8] sm:$0xff]
        %v538 = vld [vmem:[%s301 + $0xd0] sm:$0xff]
        %v539 = vld [vmem:[%s301 + $0xd8] sm:$0xff]
        %v540 = vld [vmem:[%s301 + $0xe0] sm:$0xff]
        %v541 = vld [vmem:[%s301 + $0xe8] sm:$0xff]
        %v542 = vld [vmem:[%s301 + $0xf0] sm:$0xff]
        %v543 = vld [vmem:[%s301 + $0xf8] sm:$0xff]
        %v544 = vld [vmem:[%s301 + $0x100] sm:$0xff]
        %v545 = vld [vmem:[%s301 + $0x108] sm:$0xff]
        %v546 = vld [vmem:[%s301 + $0x110] sm:$0xff]
        %v547 = vld [vmem:[%s301 + $0x118] sm:$0xff]
        %v548 = vld [vmem:[%s301 + $0x120] sm:$0xff]
        %v549 = vld [vmem:[%s301 + $0x128] sm:$0xff]
        %v550 = vld [vmem:[%s301 + $0x130] sm:$0xff]
        %v551 = vld [vmem:[%s301 + $0x138] sm:$0xff]
        %v552 = vld [vmem:[%s301 + $0x140] sm:$0xff]
        %v553 = vld [vmem:[%s301 + $0x148] sm:$0xff]
        %v554 = vld [vmem:[%s301 + $0x150] sm:$0xff]
        %v555 = vld [vmem:[%s301 + $0x158] sm:$0xff]
        %v556 = vld [vmem:[%s301 + $0x160] sm:$0xff]
        %v557 = vld [vmem:[%s301 + $0x168] sm:$0xff]
        %v558 = vld [vmem:[%s301 + $0x170] sm:$0xff]
        %v559 = vld [vmem:[%s301 + $0x178] sm:$0xff]
        %v560 = vld [vmem:[%s301 + $0x180] sm:$0xff]
        %v561 = vld [vmem:[%s301 + $0x188] sm:$0xff]
        %v562 = vld [vmem:[%s301 + $0x190] sm:$0xff]
        %v563 = vld [vmem:[%s301 + $0x198] sm:$0xff]
        %v564 = vld [vmem:[%s301 + $0x1a0] sm:$0xff]
        %v565 = vld [vmem:[%s301 + $0x1a8] sm:$0xff]
        %v566 = vld [vmem:[%s301 + $0x1b0] sm:$0xff]
        %v567 = vld [vmem:[%s301 + $0x1b8] sm:$0xff]
        %v568 = vld [vmem:[%s301 + $0x1c0] sm:$0xff]
        %v569 = vld [vmem:[%s301 + $0x1c8] sm:$0xff]
        %v570 = vld [vmem:[%s301 + $0x1d0] sm:$0xff]
        %v571 = vld [vmem:[%s301 + $0x1d8] sm:$0xff]
        %v572 = vld [vmem:[%s301 + $0x1e0] sm:$0xff]
        %v573 = vld [vmem:[%s301 + $0x1e8] sm:$0xff]
        %v574 = vld [vmem:[%s301 + $0x1f0] sm:$0xff]
        %v575 = vld [vmem:[%s301 + $0x1f8] sm:$0xff]
        %v576 = vld [vmem:[%s311] sm:$0xff]
        %v577 = vld [vmem:[%s311 + $0x8] sm:$0xff]
        %v578 = vld [vmem:[%s311 + $0x10] sm:$0xff]
        %v579 = vld [vmem:[%s311 + $0x18] sm:$0xff]
        %v580 = vld [vmem:[%s311 + $0x20] sm:$0xff]
        %v581 = vld [vmem:[%s311 + $0x28] sm:$0xff]
        %v582 = vld [vmem:[%s311 + $0x30] sm:$0xff]
        %v583 = vld [vmem:[%s311 + $0x38] sm:$0xff]
        %v584 = vld [vmem:[%s311 + $0x40] sm:$0xff]
        %v585 = vld [vmem:[%s311 + $0x48] sm:$0xff]
        %v586 = vld [vmem:[%s311 + $0x50] sm:$0xff]
        %v587 = vld [vmem:[%s311 + $0x58] sm:$0xff]
        %v588 = vld [vmem:[%s311 + $0x60] sm:$0xff]
        %v589 = vld [vmem:[%s311 + $0x68] sm:$0xff]
        %v590 = vld [vmem:[%s311 + $0x70] sm:$0xff]
        %v591 = vld [vmem:[%s311 + $0x78] sm:$0xff]
        %v592 = vld [vmem:[%s311 + $0x80] sm:$0xff]
        %v593 = vld [vmem:[%s311 + $0x88] sm:$0xff]
        %v594 = vld [vmem:[%s311 + $0x90] sm:$0xff]
        %v595 = vld [vmem:[%s311 + $0x98] sm:$0xff]
        %v596 = vld [vmem:[%s311 + $0xa0] sm:$0xff]
        %v597 = vld [vmem:[%s311 + $0xa8] sm:$0xff]
        %v598 = vld [vmem:[%s311 + $0xb0] sm:$0xff]
        %v599 = vld [vmem:[%s311 + $0xb8] sm:$0xff]
        %v600 = vld [vmem:[%s311 + $0xc0] sm:$0xff]
        %v601 = vld [vmem:[%s311 + $0xc8] sm:$0xff]
        %v602 = vld [vmem:[%s311 + $0xd0] sm:$0xff]
        %v603 = vld [vmem:[%s311 + $0xd8] sm:$0xff]
        %v604 = vld [vmem:[%s311 + $0xe0] sm:$0xff]
        %v605 = vld [vmem:[%s311 + $0xe8] sm:$0xff]
        %v606 = vld [vmem:[%s311 + $0xf0] sm:$0xff]
        %v607 = vld [vmem:[%s311 + $0xf8] sm:$0xff]
        %v608 = vld [vmem:[%s311 + $0x100] sm:$0xff]
        %v609 = vld [vmem:[%s311 + $0x108] sm:$0xff]
        %v610 = vld [vmem:[%s311 + $0x110] sm:$0xff]
        %v611 = vld [vmem:[%s311 + $0x118] sm:$0xff]
        %v612 = vld [vmem:[%s311 + $0x120] sm:$0xff]
        %v613 = vld [vmem:[%s311 + $0x128] sm:$0xff]
        %v614 = vld [vmem:[%s311 + $0x130] sm:$0xff]
        %v615 = vld [vmem:[%s311 + $0x138] sm:$0xff]
        %v616 = vld [vmem:[%s311 + $0x140] sm:$0xff]
        %v617 = vld [vmem:[%s311 + $0x148] sm:$0xff]
        %v618 = vld [vmem:[%s311 + $0x150] sm:$0xff]
        %v619 = vld [vmem:[%s311 + $0x158] sm:$0xff]
        %v620 = vld [vmem:[%s311 + $0x160] sm:$0xff]
        %v621 = vld [vmem:[%s311 + $0x168] sm:$0xff]
        %v622 = vld [vmem:[%s311 + $0x170] sm:$0xff]
        %v623 = vld [vmem:[%s311 + $0x178] sm:$0xff]
        %v624 = vld [vmem:[%s311 + $0x180] sm:$0xff]
        %v625 = vld [vmem:[%s311 + $0x188] sm:$0xff]
        %v626 = vld [vmem:[%s311 + $0x190] sm:$0xff]
        %v627 = vld [vmem:[%s311 + $0x198] sm:$0xff]
        %v628 = vld [vmem:[%s311 + $0x1a0] sm:$0xff]
        %v629 = vld [vmem:[%s311 + $0x1a8] sm:$0xff]
        %v630 = vld [vmem:[%s311 + $0x1b0] sm:$0xff]
        %v631 = vld [vmem:[%s311 + $0x1b8] sm:$0xff]
        %v632 = vld [vmem:[%s311 + $0x1c0] sm:$0xff]
        %v633 = vld [vmem:[%s311 + $0x1c8] sm:$0xff]
        %v634 = vld [vmem:[%s311 + $0x1d0] sm:$0xff]
        %v635 = vld [vmem:[%s311 + $0x1d8] sm:$0xff]
        %v636 = vld [vmem:[%s311 + $0x1e0] sm:$0xff]
        %v637 = vld [vmem:[%s311 + $0x1e8] sm:$0xff]
        %v638 = vld [vmem:[%s311 + $0x1f0] sm:$0xff]
        %v639 = vld [vmem:[%s311 + $0x1f8] sm:$0xff]
        %v704 = vunpack.c.l.b16 %v512
        %v705 = vunpack.c.h.b16 %v512
        %v706 = vunpack.c.l.b16 %v513
        %v707 = vunpack.c.h.b16 %v513
        %v708 = vunpack.c.l.b16 %v514
        %v709 = vunpack.c.h.b16 %v514
        %v710 = vunpack.c.l.b16 %v515
        %v711 = vunpack.c.h.b16 %v515
        %v712 = vunpack.c.l.b16 %v516
        %v713 = vunpack.c.h.b16 %v516
        %v714 = vunpack.c.l.b16 %v517
        %v715 = vunpack.c.h.b16 %v517
        %v716 = vunpack.c.l.b16 %v518
        %v717 = vunpack.c.h.b16 %v518
        %v718 = vunpack.c.l.b16 %v519
        %v719 = vunpack.c.h.b16 %v519
        %v720 = vunpack.c.l.b16 %v520
        %v721 = vunpack.c.h.b16 %v520
        %v722 = vunpack.c.l.b16 %v521
        %v723 = vunpack.c.h.b16 %v521
        %v724 = vunpack.c.l.b16 %v522
        %v725 = vunpack.c.h.b16 %v522
        %v726 = vunpack.c.l.b16 %v523
        %v727 = vunpack.c.h.b16 %v523
        %v728 = vunpack.c.l.b16 %v524
        %v729 = vunpack.c.h.b16 %v524
        %v730 = vunpack.c.l.b16 %v525
        %v731 = vunpack.c.h.b16 %v525
        %v732 = vunpack.c.l.b16 %v526
        %v733 = vunpack.c.h.b16 %v526
        %v734 = vunpack.c.l.b16 %v527
        %v735 = vunpack.c.h.b16 %v527
        %v736 = vunpack.c.l.b16 %v528
        %v737 = vunpack.c.h.b16 %v528
        %v738 = vunpack.c.l.b16 %v529
        %v739 = vunpack.c.h.b16 %v529
        %v740 = vunpack.c.l.b16 %v530
        %v741 = vunpack.c.h.b16 %v530
        %v742 = vunpack.c.l.b16 %v531
        %v743 = vunpack.c.h.b16 %v531
        %v744 = vunpack.c.l.b16 %v532
        %v745 = vunpack.c.h.b16 %v532
        %v746 = vunpack.c.l.b16 %v533
        %v747 = vunpack.c.h.b16 %v533
        %v748 = vunpack.c.l.b16 %v534
        %v749 = vunpack.c.h.b16 %v534
        %v750 = vunpack.c.l.b16 %v535
        %v751 = vunpack.c.h.b16 %v535
        %v752 = vunpack.c.l.b16 %v536
        %v753 = vunpack.c.h.b16 %v536
        %v754 = vunpack.c.l.b16 %v537
        %v755 = vunpack.c.h.b16 %v537
        %v756 = vunpack.c.l.b16 %v538
        %v757 = vunpack.c.h.b16 %v538
        %v758 = vunpack.c.l.b16 %v539
        %v759 = vunpack.c.h.b16 %v539
        %v760 = vunpack.c.l.b16 %v540
        %v761 = vunpack.c.h.b16 %v540
        %v762 = vunpack.c.l.b16 %v541
        %v763 = vunpack.c.h.b16 %v541
        %v764 = vunpack.c.l.b16 %v542
        %v765 = vunpack.c.h.b16 %v542
        %v766 = vunpack.c.l.b16 %v543
        %v767 = vunpack.c.h.b16 %v543
        %v768 = vunpack.c.l.b16 %v544
        %v769 = vunpack.c.h.b16 %v544
        %v770 = vunpack.c.l.b16 %v545
        %v771 = vunpack.c.h.b16 %v545
        %v772 = vunpack.c.l.b16 %v546
        %v773 = vunpack.c.h.b16 %v546
        %v774 = vunpack.c.l.b16 %v547
        %v775 = vunpack.c.h.b16 %v547
        %v776 = vunpack.c.l.b16 %v548
        %v777 = vunpack.c.h.b16 %v548
        %v778 = vunpack.c.l.b16 %v549
        %v779 = vunpack.c.h.b16 %v549
        %v780 = vunpack.c.l.b16 %v550
        %v781 = vunpack.c.h.b16 %v550
        %v782 = vunpack.c.l.b16 %v551
        %v783 = vunpack.c.h.b16 %v551
        %v784 = vunpack.c.l.b16 %v552
        %v785 = vunpack.c.h.b16 %v552
        %v786 = vunpack.c.l.b16 %v553
        %v787 = vunpack.c.h.b16 %v553
        %v788 = vunpack.c.l.b16 %v554
        %v789 = vunpack.c.h.b16 %v554
        %v790 = vunpack.c.l.b16 %v555
        %v791 = vunpack.c.h.b16 %v555
        %v792 = vunpack.c.l.b16 %v556
        %v793 = vunpack.c.h.b16 %v556
        %v794 = vunpack.c.l.b16 %v557
        %v795 = vunpack.c.h.b16 %v557
        %v796 = vunpack.c.l.b16 %v558
        %v797 = vunpack.c.h.b16 %v558
        %v798 = vunpack.c.l.b16 %v559
        %v799 = vunpack.c.h.b16 %v559
        %v800 = vunpack.c.l.b16 %v560
        %v801 = vunpack.c.h.b16 %v560
        %v802 = vunpack.c.l.b16 %v561
        %v803 = vunpack.c.h.b16 %v561
        %v804 = vunpack.c.l.b16 %v562
        %v805 = vunpack.c.h.b16 %v562
        %v806 = vunpack.c.l.b16 %v563
        %v807 = vunpack.c.h.b16 %v563
        %v808 = vunpack.c.l.b16 %v564
        %v809 = vunpack.c.h.b16 %v564
        %v810 = vunpack.c.l.b16 %v565
        %v811 = vunpack.c.h.b16 %v565
        %v812 = vunpack.c.l.b16 %v566
        %v813 = vunpack.c.h.b16 %v566
        %v814 = vunpack.c.l.b16 %v567
        %v815 = vunpack.c.h.b16 %v567
        %v816 = vunpack.c.l.b16 %v568
        %v817 = vunpack.c.h.b16 %v568
        %v818 = vunpack.c.l.b16 %v569
        %v819 = vunpack.c.h.b16 %v569
        %v820 = vunpack.c.l.b16 %v570
        %v821 = vunpack.c.h.b16 %v570
        %v822 = vunpack.c.l.b16 %v571
        %v823 = vunpack.c.h.b16 %v571
        %v824 = vunpack.c.l.b16 %v572
        %v825 = vunpack.c.h.b16 %v572
        %v826 = vunpack.c.l.b16 %v573
        %v827 = vunpack.c.h.b16 %v573
        %v828 = vunpack.c.l.b16 %v574
        %v829 = vunpack.c.h.b16 %v574
        %v830 = vunpack.c.l.b16 %v575
        %v831 = vunpack.c.h.b16 %v575
        %v832 = vpack.c.b16 %v708, %v704
        %v833 = vpack.c.b16 %v709, %v705
        %v834 = vpack.c.b16 %v710, %v706
        %v835 = vpack.c.b16 %v711, %v707
        %v836 = vpack.c.b16 %v716, %v712
        %v837 = vpack.c.b16 %v717, %v713
        %v838 = vpack.c.b16 %v718, %v714
        %v839 = vpack.c.b16 %v719, %v715
        %v840 = vpack.c.b16 %v724, %v720
        %v841 = vpack.c.b16 %v725, %v721
        %v842 = vpack.c.b16 %v726, %v722
        %v843 = vpack.c.b16 %v727, %v723
        %v844 = vpack.c.b16 %v732, %v728
        %v845 = vpack.c.b16 %v733, %v729
        %v846 = vpack.c.b16 %v734, %v730
        %v847 = vpack.c.b16 %v735, %v731
        %v848 = vpack.c.b16 %v740, %v736
        %v849 = vpack.c.b16 %v741, %v737
        %v850 = vpack.c.b16 %v742, %v738
        %v851 = vpack.c.b16 %v743, %v739
        %v852 = vpack.c.b16 %v748, %v744
        %v853 = vpack.c.b16 %v749, %v745
        %v854 = vpack.c.b16 %v750, %v746
        %v855 = vpack.c.b16 %v751, %v747
        %v856 = vpack.c.b16 %v756, %v752
        %v857 = vpack.c.b16 %v757, %v753
        %v858 = vpack.c.b16 %v758, %v754
        %v859 = vpack.c.b16 %v759, %v755
        %v860 = vpack.c.b16 %v764, %v760
        %v861 = vpack.c.b16 %v765, %v761
        %v862 = vpack.c.b16 %v766, %v762
        %v863 = vpack.c.b16 %v767, %v763
        %v864 = vpack.c.b16 %v772, %v768
        %v865 = vpack.c.b16 %v773, %v769
        %v866 = vpack.c.b16 %v774, %v770
        %v867 = vpack.c.b16 %v775, %v771
        %v868 = vpack.c.b16 %v780, %v776
        %v869 = vpack.c.b16 %v781, %v777
        %v870 = vpack.c.b16 %v782, %v778
        %v871 = vpack.c.b16 %v783, %v779
        %v872 = vpack.c.b16 %v788, %v784
        %v873 = vpack.c.b16 %v789, %v785
        %v874 = vpack.c.b16 %v790, %v786
        %v875 = vpack.c.b16 %v791, %v787
        %v876 = vpack.c.b16 %v796, %v792
        %v877 = vpack.c.b16 %v797, %v793
        %v878 = vpack.c.b16 %v798, %v794
        %v879 = vpack.c.b16 %v799, %v795
        %v880 = vpack.c.b16 %v804, %v800
        %v881 = vpack.c.b16 %v805, %v801
        %v882 = vpack.c.b16 %v806, %v802
        %v883 = vpack.c.b16 %v807, %v803
        %v884 = vpack.c.b16 %v812, %v808
        %v885 = vpack.c.b16 %v813, %v809
        %v886 = vpack.c.b16 %v814, %v810
        %v887 = vpack.c.b16 %v815, %v811
        %v888 = vpack.c.b16 %v820, %v816
        %v889 = vpack.c.b16 %v821, %v817
        %v890 = vpack.c.b16 %v822, %v818
        %v891 = vpack.c.b16 %v823, %v819
        %v892 = vpack.c.b16 %v828, %v824
        %v893 = vpack.c.b16 %v829, %v825
        %v894 = vpack.c.b16 %v830, %v826
        %v895 = vpack.c.b16 %v831, %v827
        %v1024 = vunpack.c.l.b16 %v576
        %v1025 = vunpack.c.h.b16 %v576
        %v1026 = vunpack.c.l.b16 %v577
        %v1027 = vunpack.c.h.b16 %v577
        %v1028 = vunpack.c.l.b16 %v578
        %v1029 = vunpack.c.h.b16 %v578
        %v1030 = vunpack.c.l.b16 %v579
        %v1031 = vunpack.c.h.b16 %v579
        %v1032 = vunpack.c.l.b16 %v580
        %v1033 = vunpack.c.h.b16 %v580
        %v1034 = vunpack.c.l.b16 %v581
        %v1035 = vunpack.c.h.b16 %v581
        %v1036 = vunpack.c.l.b16 %v582
        %v1037 = vunpack.c.h.b16 %v582
        %v1038 = vunpack.c.l.b16 %v583
        %v1039 = vunpack.c.h.b16 %v583
        %v1040 = vunpack.c.l.b16 %v584
        %v1041 = vunpack.c.h.b16 %v584
        %v1042 = vunpack.c.l.b16 %v585
        %v1043 = vunpack.c.h.b16 %v585
        %v1044 = vunpack.c.l.b16 %v586
        %v1045 = vunpack.c.h.b16 %v586
        %v1046 = vunpack.c.l.b16 %v587
        %v1047 = vunpack.c.h.b16 %v587
        %v1048 = vunpack.c.l.b16 %v588
        %v1049 = vunpack.c.h.b16 %v588
        %v1050 = vunpack.c.l.b16 %v589
        %v1051 = vunpack.c.h.b16 %v589
        %v1052 = vunpack.c.l.b16 %v590
        %v1053 = vunpack.c.h.b16 %v590
        %v1054 = vunpack.c.l.b16 %v591
        %v1055 = vunpack.c.h.b16 %v591
        %v1056 = vunpack.c.l.b16 %v592
        %v1057 = vunpack.c.h.b16 %v592
        %v1058 = vunpack.c.l.b16 %v593
        %v1059 = vunpack.c.h.b16 %v593
        %v1060 = vunpack.c.l.b16 %v594
        %v1061 = vunpack.c.h.b16 %v594
        %v1062 = vunpack.c.l.b16 %v595
        %v1063 = vunpack.c.h.b16 %v595
        %v1064 = vunpack.c.l.b16 %v596
        %v1065 = vunpack.c.h.b16 %v596
        %v1066 = vunpack.c.l.b16 %v597
        %v1067 = vunpack.c.h.b16 %v597
        %v1068 = vunpack.c.l.b16 %v598
        %v1069 = vunpack.c.h.b16 %v598
        %v1070 = vunpack.c.l.b16 %v599
        %v1071 = vunpack.c.h.b16 %v599
        %v1072 = vunpack.c.l.b16 %v600
        %v1073 = vunpack.c.h.b16 %v600
        %v1074 = vunpack.c.l.b16 %v601
        %v1075 = vunpack.c.h.b16 %v601
        %v1076 = vunpack.c.l.b16 %v602
        %v1077 = vunpack.c.h.b16 %v602
        %v1078 = vunpack.c.l.b16 %v603
        %v1079 = vunpack.c.h.b16 %v603
        %v1080 = vunpack.c.l.b16 %v604
        %v1081 = vunpack.c.h.b16 %v604
        %v1082 = vunpack.c.l.b16 %v605
        %v1083 = vunpack.c.h.b16 %v605
        %v1084 = vunpack.c.l.b16 %v606
        %v1085 = vunpack.c.h.b16 %v606
        %v1086 = vunpack.c.l.b16 %v607
        %v1087 = vunpack.c.h.b16 %v607
        %v1088 = vunpack.c.l.b16 %v608
        %v1089 = vunpack.c.h.b16 %v608
        %v1090 = vunpack.c.l.b16 %v609
        %v1091 = vunpack.c.h.b16 %v609
        %v1092 = vunpack.c.l.b16 %v610
        %v1093 = vunpack.c.h.b16 %v610
        %v1094 = vunpack.c.l.b16 %v611
        %v1095 = vunpack.c.h.b16 %v611
        %v1096 = vunpack.c.l.b16 %v612
        %v1097 = vunpack.c.h.b16 %v612
        %v1098 = vunpack.c.l.b16 %v613
        %v1099 = vunpack.c.h.b16 %v613
        %v1100 = vunpack.c.l.b16 %v614
        %v1101 = vunpack.c.h.b16 %v614
        %v1102 = vunpack.c.l.b16 %v615
        %v1103 = vunpack.c.h.b16 %v615
        %v1104 = vunpack.c.l.b16 %v616
        %v1105 = vunpack.c.h.b16 %v616
        %v1106 = vunpack.c.l.b16 %v617
        %v1107 = vunpack.c.h.b16 %v617
        %v1108 = vunpack.c.l.b16 %v618
        %v1109 = vunpack.c.h.b16 %v618
        %v1110 = vunpack.c.l.b16 %v619
        %v1111 = vunpack.c.h.b16 %v619
        %v1112 = vunpack.c.l.b16 %v620
        %v1113 = vunpack.c.h.b16 %v620
        %v1114 = vunpack.c.l.b16 %v621
        %v1115 = vunpack.c.h.b16 %v621
        %v1116 = vunpack.c.l.b16 %v622
        %v1117 = vunpack.c.h.b16 %v622
        %v1118 = vunpack.c.l.b16 %v623
        %v1119 = vunpack.c.h.b16 %v623
        %v1120 = vunpack.c.l.b16 %v624
        %v1121 = vunpack.c.h.b16 %v624
        %v1122 = vunpack.c.l.b16 %v625
        %v1123 = vunpack.c.h.b16 %v625
        %v1124 = vunpack.c.l.b16 %v626
        %v1125 = vunpack.c.h.b16 %v626
        %v1126 = vunpack.c.l.b16 %v627
        %v1127 = vunpack.c.h.b16 %v627
        %v1128 = vunpack.c.l.b16 %v628
        %v1129 = vunpack.c.h.b16 %v628
        %v1130 = vunpack.c.l.b16 %v629
        %v1131 = vunpack.c.h.b16 %v629
        %v1132 = vunpack.c.l.b16 %v630
        %v1133 = vunpack.c.h.b16 %v630
        %v1134 = vunpack.c.l.b16 %v631
        %v1135 = vunpack.c.h.b16 %v631
        %v1136 = vunpack.c.l.b16 %v632
        %v1137 = vunpack.c.h.b16 %v632
        %v1138 = vunpack.c.l.b16 %v633
        %v1139 = vunpack.c.h.b16 %v633
        %v1140 = vunpack.c.l.b16 %v634
        %v1141 = vunpack.c.h.b16 %v634
        %v1142 = vunpack.c.l.b16 %v635
        %v1143 = vunpack.c.h.b16 %v635
        %v1144 = vunpack.c.l.b16 %v636
        %v1145 = vunpack.c.h.b16 %v636
        %v1146 = vunpack.c.l.b16 %v637
        %v1147 = vunpack.c.h.b16 %v637
        %v1148 = vunpack.c.l.b16 %v638
        %v1149 = vunpack.c.h.b16 %v638
        %v1150 = vunpack.c.l.b16 %v639
        %v1151 = vunpack.c.h.b16 %v639
        %v1152 = vpack.c.b16 %v1026, %v1024
        %v1153 = vpack.c.b16 %v1027, %v1025
        %v1154 = vpack.c.b16 %v1030, %v1028
        %v1155 = vpack.c.b16 %v1031, %v1029
        %v1156 = vpack.c.b16 %v1034, %v1032
        %v1157 = vpack.c.b16 %v1035, %v1033
        %v1158 = vpack.c.b16 %v1038, %v1036
        %v1159 = vpack.c.b16 %v1039, %v1037
        %v1160 = vpack.c.b16 %v1042, %v1040
        %v1161 = vpack.c.b16 %v1043, %v1041
        %v1162 = vpack.c.b16 %v1046, %v1044
        %v1163 = vpack.c.b16 %v1047, %v1045
        %v1164 = vpack.c.b16 %v1050, %v1048
        %v1165 = vpack.c.b16 %v1051, %v1049
        %v1166 = vpack.c.b16 %v1054, %v1052
        %v1167 = vpack.c.b16 %v1055, %v1053
        %v1168 = vpack.c.b16 %v1058, %v1056
        %v1169 = vpack.c.b16 %v1059, %v1057
        %v1170 = vpack.c.b16 %v1062, %v1060
        %v1171 = vpack.c.b16 %v1063, %v1061
        %v1172 = vpack.c.b16 %v1066, %v1064
        %v1173 = vpack.c.b16 %v1067, %v1065
        %v1174 = vpack.c.b16 %v1070, %v1068
        %v1175 = vpack.c.b16 %v1071, %v1069
        %v1176 = vpack.c.b16 %v1074, %v1072
        %v1177 = vpack.c.b16 %v1075, %v1073
        %v1178 = vpack.c.b16 %v1078, %v1076
        %v1179 = vpack.c.b16 %v1079, %v1077
        %v1180 = vpack.c.b16 %v1082, %v1080
        %v1181 = vpack.c.b16 %v1083, %v1081
        %v1182 = vpack.c.b16 %v1086, %v1084
        %v1183 = vpack.c.b16 %v1087, %v1085
        %v1184 = vpack.c.b16 %v1090, %v1088
        %v1185 = vpack.c.b16 %v1091, %v1089
        %v1186 = vpack.c.b16 %v1094, %v1092
        %v1187 = vpack.c.b16 %v1095, %v1093
        %v1188 = vpack.c.b16 %v1098, %v1096
        %v1189 = vpack.c.b16 %v1099, %v1097
        %v1190 = vpack.c.b16 %v1102, %v1100
        %v1191 = vpack.c.b16 %v1103, %v1101
        %v1192 = vpack.c.b16 %v1106, %v1104
        %v1193 = vpack.c.b16 %v1107, %v1105
        %v1194 = vpack.c.b16 %v1110, %v1108
        %v1195 = vpack.c.b16 %v1111, %v1109
        %v1196 = vpack.c.b16 %v1114, %v1112
        %v1197 = vpack.c.b16 %v1115, %v1113
        %v1198 = vpack.c.b16 %v1118, %v1116
        %v1199 = vpack.c.b16 %v1119, %v1117
        %v1200 = vpack.c.b16 %v1122, %v1120
        %v1201 = vpack.c.b16 %v1123, %v1121
        %v1202 = vpack.c.b16 %v1126, %v1124
        %v1203 = vpack.c.b16 %v1127, %v1125
        %v1204 = vpack.c.b16 %v1130, %v1128
        %v1205 = vpack.c.b16 %v1131, %v1129
        %v1206 = vpack.c.b16 %v1134, %v1132
        %v1207 = vpack.c.b16 %v1135, %v1133
        %v1208 = vpack.c.b16 %v1138, %v1136
        %v1209 = vpack.c.b16 %v1139, %v1137
        %v1210 = vpack.c.b16 %v1142, %v1140
        %v1211 = vpack.c.b16 %v1143, %v1141
        %v1212 = vpack.c.b16 %v1146, %v1144
        %v1213 = vpack.c.b16 %v1147, %v1145
        %v1214 = vpack.c.b16 %v1150, %v1148
        %v1215 = vpack.c.b16 %v1151, %v1149
        %1280 = vmatpush.bf16.msra.mxu0 %v1166
        %1281 = vmatpush.bf16.msra.mxu0 %v1164
        %1282 = vmatpush.bf16.msra.mxu0 %v1162
        %1283 = vmatpush.bf16.msra.mxu0 %v1160
        %1284 = vmatpush.bf16.msra.mxu0 %v1158
        %1285 = vmatpush.bf16.msra.mxu0 %v1156
        %1286 = vmatpush.bf16.msra.mxu0 %v1154
        %1287 = vmatpush.bf16.msra.mxu0 %v1152
        %1288 = vmatmul.bf16.gmra.mxu0 %v832
        %v1289 = vpop.f32.mrf.mxu0
        %v1290 = vadd.f32 0.0, %v1289
        %v1291 = vpop.f32.mrf.mxu0
        %v1292 = vadd.f32 0.0, %v1291
        %1293 = vmatmul.bf16.gmra.mxu0 %v836
        %v1294 = vpop.f32.mrf.mxu0
        %v1295 = vadd.f32 0.0, %v1294
        %v1296 = vpop.f32.mrf.mxu0
        %v1297 = vadd.f32 0.0, %v1296
        %1298 = vmatmul.bf16.gmra.mxu0 %v840
        %v1299 = vpop.f32.mrf.mxu0
        %v1300 = vadd.f32 0.0, %v1299
        %v1301 = vpop.f32.mrf.mxu0
        %v1302 = vadd.f32 0.0, %v1301
        %1303 = vmatmul.bf16.gmra.mxu0 %v844
        %v1304 = vpop.f32.mrf.mxu0
        %v1305 = vadd.f32 0.0, %v1304
        %v1306 = vpop.f32.mrf.mxu0
        %v1307 = vadd.f32 0.0, %v1306
        %1308 = vmatmul.bf16.gmra.mxu0 %v848
        %v1309 = vpop.f32.mrf.mxu0
        %v1310 = vadd.f32 0.0, %v1309
        %v1311 = vpop.f32.mrf.mxu0
        %v1312 = vadd.f32 0.0, %v1311
        %1313 = vmatmul.bf16.gmra.mxu0 %v852
        %v1314 = vpop.f32.mrf.mxu0
        %v1315 = vadd.f32 0.0, %v1314
        %v1316 = vpop.f32.mrf.mxu0
        %v1317 = vadd.f32 0.0, %v1316
        %1318 = vmatmul.bf16.gmra.mxu0 %v856
        %v1319 = vpop.f32.mrf.mxu0
        %v1320 = vadd.f32 0.0, %v1319
        %v1321 = vpop.f32.mrf.mxu0
        %v1322 = vadd.f32 0.0, %v1321
        %1323 = vmatmul.bf16.gmra.mxu0 %v860
        %v1324 = vpop.f32.mrf.mxu0
        %v1325 = vadd.f32 0.0, %v1324
        %v1326 = vpop.f32.mrf.mxu0
        %v1327 = vadd.f32 0.0, %v1326
        %1328 = vmatmul.bf16.gmra.mxu0 %v864
        %v1329 = vpop.f32.mrf.mxu0
        %v1330 = vadd.f32 0.0, %v1329
        %v1331 = vpop.f32.mrf.mxu0
        %v1332 = vadd.f32 0.0, %v1331
        %1333 = vmatmul.bf16.gmra.mxu0 %v868
        %v1334 = vpop.f32.mrf.mxu0
        %v1335 = vadd.f32 0.0, %v1334
        %v1336 = vpop.f32.mrf.mxu0
        %v1337 = vadd.f32 0.0, %v1336
        %1338 = vmatmul.bf16.gmra.mxu0 %v872
        %v1339 = vpop.f32.mrf.mxu0
        %v1340 = vadd.f32 0.0, %v1339
        %v1341 = vpop.f32.mrf.mxu0
        %v1342 = vadd.f32 0.0, %v1341
        %1343 = vmatmul.bf16.gmra.mxu0 %v876
        %v1344 = vpop.f32.mrf.mxu0
        %v1345 = vadd.f32 0.0, %v1344
        %v1346 = vpop.f32.mrf.mxu0
        %v1347 = vadd.f32 0.0, %v1346
        %1348 = vmatmul.bf16.gmra.mxu0 %v880
        %v1349 = vpop.f32.mrf.mxu0
        %v1350 = vadd.f32 0.0, %v1349
        %v1351 = vpop.f32.mrf.mxu0
        %v1352 = vadd.f32 0.0, %v1351
        %1353 = vmatmul.bf16.gmra.mxu0 %v884
        %v1354 = vpop.f32.mrf.mxu0
        %v1355 = vadd.f32 0.0, %v1354
        %v1356 = vpop.f32.mrf.mxu0
        %v1357 = vadd.f32 0.0, %v1356
        %1358 = vmatmul.bf16.gmra.mxu0 %v888
        %v1359 = vpop.f32.mrf.mxu0
        %v1360 = vadd.f32 0.0, %v1359
        %v1361 = vpop.f32.mrf.mxu0
        %v1362 = vadd.f32 0.0, %v1361
        %1363 = vmatmul.bf16.gmra.mxu0 %v892
        %v1364 = vpop.f32.mrf.mxu0
        %v1365 = vadd.f32 0.0, %v1364
        %v1366 = vpop.f32.mrf.mxu0
        %v1367 = vadd.f32 0.0, %v1366
        %1368 = vdwg.mxu0
        %1369 = vmatpush.bf16.msra.mxu0 %v1182
        %1370 = vmatpush.bf16.msra.mxu0 %v1180
        %1371 = vmatpush.bf16.msra.mxu0 %v1178
        %1372 = vmatpush.bf16.msra.mxu0 %v1176
        %1373 = vmatpush.bf16.msra.mxu0 %v1174
        %1374 = vmatpush.bf16.msra.mxu0 %v1172
        %1375 = vmatpush.bf16.msra.mxu0 %v1170
        %1376 = vmatpush.bf16.msra.mxu0 %v1168
        %1377 = vmatmul.bf16.gmra.mxu0 %v833
        %v1378 = vpop.f32.mrf.mxu0
        %v1379 = vadd.f32 %v1290, %v1378
        %v1380 = vpop.f32.mrf.mxu0
        %v1381 = vadd.f32 %v1292, %v1380
        %1382 = vmatmul.bf16.gmra.mxu0 %v837
        %v1383 = vpop.f32.mrf.mxu0
        %v1384 = vadd.f32 %v1295, %v1383
        %v1385 = vpop.f32.mrf.mxu0
        %v1386 = vadd.f32 %v1297, %v1385
        %1387 = vmatmul.bf16.gmra.mxu0 %v841
        %v1388 = vpop.f32.mrf.mxu0
        %v1389 = vadd.f32 %v1300, %v1388
        %v1390 = vpop.f32.mrf.mxu0
        %v1391 = vadd.f32 %v1302, %v1390
        %1392 = vmatmul.bf16.gmra.mxu0 %v845
        %v1393 = vpop.f32.mrf.mxu0
        %v1394 = vadd.f32 %v1305, %v1393
        %v1395 = vpop.f32.mrf.mxu0
        %v1396 = vadd.f32 %v1307, %v1395
        %1397 = vmatmul.bf16.gmra.mxu0 %v849
        %v1398 = vpop.f32.mrf.mxu0
        %v1399 = vadd.f32 %v1310, %v1398
        %v1400 = vpop.f32.mrf.mxu0
        %v1401 = vadd.f32 %v1312, %v1400
        %1402 = vmatmul.bf16.gmra.mxu0 %v853
        %v1403 = vpop.f32.mrf.mxu0
        %v1404 = vadd.f32 %v1315, %v1403
        %v1405 = vpop.f32.mrf.mxu0
        %v1406 = vadd.f32 %v1317, %v1405
        %1407 = vmatmul.bf16.gmra.mxu0 %v857
        %v1408 = vpop.f32.mrf.mxu0
        %v1409 = vadd.f32 %v1320, %v1408
        %v1410 = vpop.f32.mrf.mxu0
        %v1411 = vadd.f32 %v1322, %v1410
        %1412 = vmatmul.bf16.gmra.mxu0 %v861
        %v1413 = vpop.f32.mrf.mxu0
        %v1414 = vadd.f32 %v1325, %v1413
        %v1415 = vpop.f32.mrf.mxu0
        %v1416 = vadd.f32 %v1327, %v1415
        %1417 = vmatmul.bf16.gmra.mxu0 %v865
        %v1418 = vpop.f32.mrf.mxu0
        %v1419 = vadd.f32 %v1330, %v1418
        %v1420 = vpop.f32.mrf.mxu0
        %v1421 = vadd.f32 %v1332, %v1420
        %1422 = vmatmul.bf16.gmra.mxu0 %v869
        %v1423 = vpop.f32.mrf.mxu0
        %v1424 = vadd.f32 %v1335, %v1423
        %v1425 = vpop.f32.mrf.mxu0
        %v1426 = vadd.f32 %v1337, %v1425
        %1427 = vmatmul.bf16.gmra.mxu0 %v873
        %v1428 = vpop.f32.mrf.mxu0
        %v1429 = vadd.f32 %v1340, %v1428
        %v1430 = vpop.f32.mrf.mxu0
        %v1431 = vadd.f32 %v1342, %v1430
        %1432 = vmatmul.bf16.gmra.mxu0 %v877
        %v1433 = vpop.f32.mrf.mxu0
        %v1434 = vadd.f32 %v1345, %v1433
        %v1435 = vpop.f32.mrf.mxu0
        %v1436 = vadd.f32 %v1347, %v1435
        %1437 = vmatmul.bf16.gmra.mxu0 %v881
        %v1438 = vpop.f32.mrf.mxu0
        %v1439 = vadd.f32 %v1350, %v1438
        %v1440 = vpop.f32.mrf.mxu0
        %v1441 = vadd.f32 %v1352, %v1440
        %1442 = vmatmul.bf16.gmra.mxu0 %v885
        %v1443 = vpop.f32.mrf.mxu0
        %v1444 = vadd.f32 %v1355, %v1443
        %v1445 = vpop.f32.mrf.mxu0
        %v1446 = vadd.f32 %v1357, %v1445
        %1447 = vmatmul.bf16.gmra.mxu0 %v889
        %v1448 = vpop.f32.mrf.mxu0
        %v1449 = vadd.f32 %v1360, %v1448
        %v1450 = vpop.f32.mrf.mxu0
        %v1451 = vadd.f32 %v1362, %v1450
        %1452 = vmatmul.bf16.gmra.mxu0 %v893
        %v1453 = vpop.f32.mrf.mxu0
        %v1454 = vadd.f32 %v1365, %v1453
        %v1455 = vpop.f32.mrf.mxu0
        %v1456 = vadd.f32 %v1367, %v1455
        %1457 = vdwg.mxu0
        %1458 = vmatpush.bf16.msra.mxu0 %v1198
        %1459 = vmatpush.bf16.msra.mxu0 %v1196
        %1460 = vmatpush.bf16.msra.mxu0 %v1194
        %1461 = vmatpush.bf16.msra.mxu0 %v1192
        %1462 = vmatpush.bf16.msra.mxu0 %v1190
        %1463 = vmatpush.bf16.msra.mxu0 %v1188
        %1464 = vmatpush.bf16.msra.mxu0 %v1186
        %1465 = vmatpush.bf16.msra.mxu0 %v1184
        %1466 = vmatmul.bf16.gmra.mxu0 %v834
        %v1467 = vpop.f32.mrf.mxu0
        %v1468 = vadd.f32 %v1379, %v1467
        %v1469 = vpop.f32.mrf.mxu0
        %v1470 = vadd.f32 %v1381, %v1469
        %1471 = vmatmul.bf16.gmra.mxu0 %v838
        %v1472 = vpop.f32.mrf.mxu0
        %v1473 = vadd.f32 %v1384, %v1472
        %v1474 = vpop.f32.mrf.mxu0
        %v1475 = vadd.f32 %v1386, %v1474
        %1476 = vmatmul.bf16.gmra.mxu0 %v842
        %v1477 = vpop.f32.mrf.mxu0
        %v1478 = vadd.f32 %v1389, %v1477
        %v1479 = vpop.f32.mrf.mxu0
        %v1480 = vadd.f32 %v1391, %v1479
        %1481 = vmatmul.bf16.gmra.mxu0 %v846
        %v1482 = vpop.f32.mrf.mxu0
        %v1483 = vadd.f32 %v1394, %v1482
        %v1484 = vpop.f32.mrf.mxu0
        %v1485 = vadd.f32 %v1396, %v1484
        %1486 = vmatmul.bf16.gmra.mxu0 %v850
        %v1487 = vpop.f32.mrf.mxu0
        %v1488 = vadd.f32 %v1399, %v1487
        %v1489 = vpop.f32.mrf.mxu0
        %v1490 = vadd.f32 %v1401, %v1489
        %1491 = vmatmul.bf16.gmra.mxu0 %v854
        %v1492 = vpop.f32.mrf.mxu0
        %v1493 = vadd.f32 %v1404, %v1492
        %v1494 = vpop.f32.mrf.mxu0
        %v1495 = vadd.f32 %v1406, %v1494
        %1496 = vmatmul.bf16.gmra.mxu0 %v858
        %v1497 = vpop.f32.mrf.mxu0
        %v1498 = vadd.f32 %v1409, %v1497
        %v1499 = vpop.f32.mrf.mxu0
        %v1500 = vadd.f32 %v1411, %v1499
        %1501 = vmatmul.bf16.gmra.mxu0 %v862
        %v1502 = vpop.f32.mrf.mxu0
        %v1503 = vadd.f32 %v1414, %v1502
        %v1504 = vpop.f32.mrf.mxu0
        %v1505 = vadd.f32 %v1416, %v1504
        %1506 = vmatmul.bf16.gmra.mxu0 %v866
        %v1507 = vpop.f32.mrf.mxu0
        %v1508 = vadd.f32 %v1419, %v1507
        %v1509 = vpop.f32.mrf.mxu0
        %v1510 = vadd.f32 %v1421, %v1509
        %1511 = vmatmul.bf16.gmra.mxu0 %v870
        %v1512 = vpop.f32.mrf.mxu0
        %v1513 = vadd.f32 %v1424, %v1512
        %v1514 = vpop.f32.mrf.mxu0
        %v1515 = vadd.f32 %v1426, %v1514
        %1516 = vmatmul.bf16.gmra.mxu0 %v874
        %v1517 = vpop.f32.mrf.mxu0
        %v1518 = vadd.f32 %v1429, %v1517
        %v1519 = vpop.f32.mrf.mxu0
        %v1520 = vadd.f32 %v1431, %v1519
        %1521 = vmatmul.bf16.gmra.mxu0 %v878
        %v1522 = vpop.f32.mrf.mxu0
        %v1523 = vadd.f32 %v1434, %v1522
        %v1524 = vpop.f32.mrf.mxu0
        %v1525 = vadd.f32 %v1436, %v1524
        %1526 = vmatmul.bf16.gmra.mxu0 %v882
        %v1527 = vpop.f32.mrf.mxu0
        %v1528 = vadd.f32 %v1439, %v1527
        %v1529 = vpop.f32.mrf.mxu0
        %v1530 = vadd.f32 %v1441, %v1529
        %1531 = vmatmul.bf16.gmra.mxu0 %v886
        %v1532 = vpop.f32.mrf.mxu0
        %v1533 = vadd.f32 %v1444, %v1532
        %v1534 = vpop.f32.mrf.mxu0
        %v1535 = vadd.f32 %v1446, %v1534
        %1536 = vmatmul.bf16.gmra.mxu0 %v890
        %v1537 = vpop.f32.mrf.mxu0
        %v1538 = vadd.f32 %v1449, %v1537
        %v1539 = vpop.f32.mrf.mxu0
        %v1540 = vadd.f32 %v1451, %v1539
        %1541 = vmatmul.bf16.gmra.mxu0 %v894
        %v1542 = vpop.f32.mrf.mxu0
        %v1543 = vadd.f32 %v1454, %v1542
        %v1544 = vpop.f32.mrf.mxu0
        %v1545 = vadd.f32 %v1456, %v1544
        %1546 = vdwg.mxu0
        %1547 = vmatpush.bf16.msra.mxu0 %v1214
        %1548 = vmatpush.bf16.msra.mxu0 %v1212
        %1549 = vmatpush.bf16.msra.mxu0 %v1210
        %1550 = vmatpush.bf16.msra.mxu0 %v1208
        %1551 = vmatpush.bf16.msra.mxu0 %v1206
        %1552 = vmatpush.bf16.msra.mxu0 %v1204
        %1553 = vmatpush.bf16.msra.mxu0 %v1202
        %1554 = vmatpush.bf16.msra.mxu0 %v1200
        %1555 = vmatmul.bf16.gmra.mxu0 %v835
        %v1556 = vpop.f32.mrf.mxu0
        %v1557 = vadd.f32 %v1468, %v1556
        %v1558 = vpop.f32.mrf.mxu0
        %v1559 = vadd.f32 %v1470, %v1558
        %1560 = vmatmul.bf16.gmra.mxu0 %v839
        %v1561 = vpop.f32.mrf.mxu0
        %v1562 = vadd.f32 %v1473, %v1561
        %v1563 = vpop.f32.mrf.mxu0
        %v1564 = vadd.f32 %v1475, %v1563
        %1565 = vmatmul.bf16.gmra.mxu0 %v843
        %v1566 = vpop.f32.mrf.mxu0
        %v1567 = vadd.f32 %v1478, %v1566
        %v1568 = vpop.f32.mrf.mxu0
        %v1569 = vadd.f32 %v1480, %v1568
        %1570 = vmatmul.bf16.gmra.mxu0 %v847
        %v1571 = vpop.f32.mrf.mxu0
        %v1572 = vadd.f32 %v1483, %v1571
        %v1573 = vpop.f32.mrf.mxu0
        %v1574 = vadd.f32 %v1485, %v1573
        %1575 = vmatmul.bf16.gmra.mxu0 %v851
        %v1576 = vpop.f32.mrf.mxu0
        %v1577 = vadd.f32 %v1488, %v1576
        %v1578 = vpop.f32.mrf.mxu0
        %v1579 = vadd.f32 %v1490, %v1578
        %1580 = vmatmul.bf16.gmra.mxu0 %v855
        %v1581 = vpop.f32.mrf.mxu0
        %v1582 = vadd.f32 %v1493, %v1581
        %v1583 = vpop.f32.mrf.mxu0
        %v1584 = vadd.f32 %v1495, %v1583
        %1585 = vmatmul.bf16.gmra.mxu0 %v859
        %v1586 = vpop.f32.mrf.mxu0
        %v1587 = vadd.f32 %v1498, %v1586
        %v1588 = vpop.f32.mrf.mxu0
        %v1589 = vadd.f32 %v1500, %v1588
        %1590 = vmatmul.bf16.gmra.mxu0 %v863
        %v1591 = vpop.f32.mrf.mxu0
        %v1592 = vadd.f32 %v1503, %v1591
        %v1593 = vpop.f32.mrf.mxu0
        %v1594 = vadd.f32 %v1505, %v1593
        %1595 = vmatmul.bf16.gmra.mxu0 %v867
        %v1596 = vpop.f32.mrf.mxu0
        %v1597 = vadd.f32 %v1508, %v1596
        %v1598 = vpop.f32.mrf.mxu0
        %v1599 = vadd.f32 %v1510, %v1598
        %1600 = vmatmul.bf16.gmra.mxu0 %v871
        %v1601 = vpop.f32.mrf.mxu0
        %v1602 = vadd.f32 %v1513, %v1601
        %v1603 = vpop.f32.mrf.mxu0
        %v1604 = vadd.f32 %v1515, %v1603
        %1605 = vmatmul.bf16.gmra.mxu0 %v875
        %v1606 = vpop.f32.mrf.mxu0
        %v1607 = vadd.f32 %v1518, %v1606
        %v1608 = vpop.f32.mrf.mxu0
        %v1609 = vadd.f32 %v1520, %v1608
        %1610 = vmatmul.bf16.gmra.mxu0 %v879
        %v1611 = vpop.f32.mrf.mxu0
        %v1612 = vadd.f32 %v1523, %v1611
        %v1613 = vpop.f32.mrf.mxu0
        %v1614 = vadd.f32 %v1525, %v1613
        %1615 = vmatmul.bf16.gmra.mxu0 %v883
        %v1616 = vpop.f32.mrf.mxu0
        %v1617 = vadd.f32 %v1528, %v1616
        %v1618 = vpop.f32.mrf.mxu0
        %v1619 = vadd.f32 %v1530, %v1618
        %1620 = vmatmul.bf16.gmra.mxu0 %v887
        %v1621 = vpop.f32.mrf.mxu0
        %v1622 = vadd.f32 %v1533, %v1621
        %v1623 = vpop.f32.mrf.mxu0
        %v1624 = vadd.f32 %v1535, %v1623
        %1625 = vmatmul.bf16.gmra.mxu0 %v891
        %v1626 = vpop.f32.mrf.mxu0
        %v1627 = vadd.f32 %v1538, %v1626
        %v1628 = vpop.f32.mrf.mxu0
        %v1629 = vadd.f32 %v1540, %v1628
        %1630 = vmatmul.bf16.gmra.mxu0 %v895
        %v1631 = vpop.f32.mrf.mxu0
        %v1632 = vadd.f32 %v1543, %v1631
        %v1633 = vpop.f32.mrf.mxu0
        %v1634 = vadd.f32 %v1545, %v1633
        %1635 = vdwg.mxu0
        %1636 = vmatpush.bf16.msra.mxu0 %v1167
        %1637 = vmatpush.bf16.msra.mxu0 %v1165
        %1638 = vmatpush.bf16.msra.mxu0 %v1163
        %1639 = vmatpush.bf16.msra.mxu0 %v1161
        %1640 = vmatpush.bf16.msra.mxu0 %v1159
        %1641 = vmatpush.bf16.msra.mxu0 %v1157
        %1642 = vmatpush.bf16.msra.mxu0 %v1155
        %1643 = vmatpush.bf16.msra.mxu0 %v1153
        %1644 = vmatmul.bf16.gmra.mxu0 %v832
        %v1645 = vpop.f32.mrf.mxu0
        %v1646 = vadd.f32 0.0, %v1645
        %v1647 = vpop.f32.mrf.mxu0
        %v1648 = vadd.f32 0.0, %v1647
        %1649 = vmatmul.bf16.gmra.mxu0 %v836
        %v1650 = vpop.f32.mrf.mxu0
        %v1651 = vadd.f32 0.0, %v1650
        %v1652 = vpop.f32.mrf.mxu0
        %v1653 = vadd.f32 0.0, %v1652
        %1654 = vmatmul.bf16.gmra.mxu0 %v840
        %v1655 = vpop.f32.mrf.mxu0
        %v1656 = vadd.f32 0.0, %v1655
        %v1657 = vpop.f32.mrf.mxu0
        %v1658 = vadd.f32 0.0, %v1657
        %1659 = vmatmul.bf16.gmra.mxu0 %v844
        %v1660 = vpop.f32.mrf.mxu0
        %v1661 = vadd.f32 0.0, %v1660
        %v1662 = vpop.f32.mrf.mxu0
        %v1663 = vadd.f32 0.0, %v1662
        %1664 = vmatmul.bf16.gmra.mxu0 %v848
        %v1665 = vpop.f32.mrf.mxu0
        %v1666 = vadd.f32 0.0, %v1665
        %v1667 = vpop.f32.mrf.mxu0
        %v1668 = vadd.f32 0.0, %v1667
        %1669 = vmatmul.bf16.gmra.mxu0 %v852
        %v1670 = vpop.f32.mrf.mxu0
        %v1671 = vadd.f32 0.0, %v1670
        %v1672 = vpop.f32.mrf.mxu0
        %v1673 = vadd.f32 0.0, %v1672
        %1674 = vmatmul.bf16.gmra.mxu0 %v856
        %v1675 = vpop.f32.mrf.mxu0
        %v1676 = vadd.f32 0.0, %v1675
        %v1677 = vpop.f32.mrf.mxu0
        %v1678 = vadd.f32 0.0, %v1677
        %1679 = vmatmul.bf16.gmra.mxu0 %v860
        %v1680 = vpop.f32.mrf.mxu0
        %v1681 = vadd.f32 0.0, %v1680
        %v1682 = vpop.f32.mrf.mxu0
        %v1683 = vadd.f32 0.0, %v1682
        %1684 = vmatmul.bf16.gmra.mxu0 %v864
        %v1685 = vpop.f32.mrf.mxu0
        %v1686 = vadd.f32 0.0, %v1685
        %v1687 = vpop.f32.mrf.mxu0
        %v1688 = vadd.f32 0.0, %v1687
        %1689 = vmatmul.bf16.gmra.mxu0 %v868
        %v1690 = vpop.f32.mrf.mxu0
        %v1691 = vadd.f32 0.0, %v1690
        %v1692 = vpop.f32.mrf.mxu0
        %v1693 = vadd.f32 0.0, %v1692
        %1694 = vmatmul.bf16.gmra.mxu0 %v872
        %v1695 = vpop.f32.mrf.mxu0
        %v1696 = vadd.f32 0.0, %v1695
        %v1697 = vpop.f32.mrf.mxu0
        %v1698 = vadd.f32 0.0, %v1697
        %1699 = vmatmul.bf16.gmra.mxu0 %v876
        %v1700 = vpop.f32.mrf.mxu0
        %v1701 = vadd.f32 0.0, %v1700
        %v1702 = vpop.f32.mrf.mxu0
        %v1703 = vadd.f32 0.0, %v1702
        %1704 = vmatmul.bf16.gmra.mxu0 %v880
        %v1705 = vpop.f32.mrf.mxu0
        %v1706 = vadd.f32 0.0, %v1705
        %v1707 = vpop.f32.mrf.mxu0
        %v1708 = vadd.f32 0.0, %v1707
        %1709 = vmatmul.bf16.gmra.mxu0 %v884
        %v1710 = vpop.f32.mrf.mxu0
        %v1711 = vadd.f32 0.0, %v1710
        %v1712 = vpop.f32.mrf.mxu0
        %v1713 = vadd.f32 0.0, %v1712
        %1714 = vmatmul.bf16.gmra.mxu0 %v888
        %v1715 = vpop.f32.mrf.mxu0
        %v1716 = vadd.f32 0.0, %v1715
        %v1717 = vpop.f32.mrf.mxu0
        %v1718 = vadd.f32 0.0, %v1717
        %1719 = vmatmul.bf16.gmra.mxu0 %v892
        %v1720 = vpop.f32.mrf.mxu0
        %v1721 = vadd.f32 0.0, %v1720
        %v1722 = vpop.f32.mrf.mxu0
        %v1723 = vadd.f32 0.0, %v1722
        %1724 = vdwg.mxu0
        %1725 = vmatpush.bf16.msra.mxu0 %v1183
        %1726 = vmatpush.bf16.msra.mxu0 %v1181
        %1727 = vmatpush.bf16.msra.mxu0 %v1179
        %1728 = vmatpush.bf16.msra.mxu0 %v1177
        %1729 = vmatpush.bf16.msra.mxu0 %v1175
        %1730 = vmatpush.bf16.msra.mxu0 %v1173
        %1731 = vmatpush.bf16.msra.mxu0 %v1171
        %1732 = vmatpush.bf16.msra.mxu0 %v1169
        %1733 = vmatmul.bf16.gmra.mxu0 %v833
        %v1734 = vpop.f32.mrf.mxu0
        %v1735 = vadd.f32 %v1646, %v1734
        %v1736 = vpop.f32.mrf.mxu0
        %v1737 = vadd.f32 %v1648, %v1736
        %1738 = vmatmul.bf16.gmra.mxu0 %v837
        %v1739 = vpop.f32.mrf.mxu0
        %v1740 = vadd.f32 %v1651, %v1739
        %v1741 = vpop.f32.mrf.mxu0
        %v1742 = vadd.f32 %v1653, %v1741
        %1743 = vmatmul.bf16.gmra.mxu0 %v841
        %v1744 = vpop.f32.mrf.mxu0
        %v1745 = vadd.f32 %v1656, %v1744
        %v1746 = vpop.f32.mrf.mxu0
        %v1747 = vadd.f32 %v1658, %v1746
        %1748 = vmatmul.bf16.gmra.mxu0 %v845
        %v1749 = vpop.f32.mrf.mxu0
        %v1750 = vadd.f32 %v1661, %v1749
        %v1751 = vpop.f32.mrf.mxu0
        %v1752 = vadd.f32 %v1663, %v1751
        %1753 = vmatmul.bf16.gmra.mxu0 %v849
        %v1754 = vpop.f32.mrf.mxu0
        %v1755 = vadd.f32 %v1666, %v1754
        %v1756 = vpop.f32.mrf.mxu0
        %v1757 = vadd.f32 %v1668, %v1756
        %1758 = vmatmul.bf16.gmra.mxu0 %v853
        %v1759 = vpop.f32.mrf.mxu0
        %v1760 = vadd.f32 %v1671, %v1759
        %v1761 = vpop.f32.mrf.mxu0
        %v1762 = vadd.f32 %v1673, %v1761
        %1763 = vmatmul.bf16.gmra.mxu0 %v857
        %v1764 = vpop.f32.mrf.mxu0
        %v1765 = vadd.f32 %v1676, %v1764
        %v1766 = vpop.f32.mrf.mxu0
        %v1767 = vadd.f32 %v1678, %v1766
        %1768 = vmatmul.bf16.gmra.mxu0 %v861
        %v1769 = vpop.f32.mrf.mxu0
        %v1770 = vadd.f32 %v1681, %v1769
        %v1771 = vpop.f32.mrf.mxu0
        %v1772 = vadd.f32 %v1683, %v1771
        %1773 = vmatmul.bf16.gmra.mxu0 %v865
        %v1774 = vpop.f32.mrf.mxu0
        %v1775 = vadd.f32 %v1686, %v1774
        %v1776 = vpop.f32.mrf.mxu0
        %v1777 = vadd.f32 %v1688, %v1776
        %1778 = vmatmul.bf16.gmra.mxu0 %v869
        %v1779 = vpop.f32.mrf.mxu0
        %v1780 = vadd.f32 %v1691, %v1779
        %v1781 = vpop.f32.mrf.mxu0
        %v1782 = vadd.f32 %v1693, %v1781
        %1783 = vmatmul.bf16.gmra.mxu0 %v873
        %v1784 = vpop.f32.mrf.mxu0
        %v1785 = vadd.f32 %v1696, %v1784
        %v1786 = vpop.f32.mrf.mxu0
        %v1787 = vadd.f32 %v1698, %v1786
        %1788 = vmatmul.bf16.gmra.mxu0 %v877
        %v1789 = vpop.f32.mrf.mxu0
        %v1790 = vadd.f32 %v1701, %v1789
        %v1791 = vpop.f32.mrf.mxu0
        %v1792 = vadd.f32 %v1703, %v1791
        %1793 = vmatmul.bf16.gmra.mxu0 %v881
        %v1794 = vpop.f32.mrf.mxu0
        %v1795 = vadd.f32 %v1706, %v1794
        %v1796 = vpop.f32.mrf.mxu0
        %v1797 = vadd.f32 %v1708, %v1796
        %1798 = vmatmul.bf16.gmra.mxu0 %v885
        %v1799 = vpop.f32.mrf.mxu0
        %v1800 = vadd.f32 %v1711, %v1799
        %v1801 = vpop.f32.mrf.mxu0
        %v1802 = vadd.f32 %v1713, %v1801
        %1803 = vmatmul.bf16.gmra.mxu0 %v889
        %v1804 = vpop.f32.mrf.mxu0
        %v1805 = vadd.f32 %v1716, %v1804
        %v1806 = vpop.f32.mrf.mxu0
        %v1807 = vadd.f32 %v1718, %v1806
        %1808 = vmatmul.bf16.gmra.mxu0 %v893
        %v1809 = vpop.f32.mrf.mxu0
        %v1810 = vadd.f32 %v1721, %v1809
        %v1811 = vpop.f32.mrf.mxu0
        %v1812 = vadd.f32 %v1723, %v1811
        %1813 = vdwg.mxu0
        %1814 = vmatpush.bf16.msra.mxu0 %v1199
        %1815 = vmatpush.bf16.msra.mxu0 %v1197
        %1816 = vmatpush.bf16.msra.mxu0 %v1195
        %1817 = vmatpush.bf16.msra.mxu0 %v1193
        %1818 = vmatpush.bf16.msra.mxu0 %v1191
        %1819 = vmatpush.bf16.msra.mxu0 %v1189
        %1820 = vmatpush.bf16.msra.mxu0 %v1187
        %1821 = vmatpush.bf16.msra.mxu0 %v1185
        %1822 = vmatmul.bf16.gmra.mxu0 %v834
        %v1823 = vpop.f32.mrf.mxu0
        %v1824 = vadd.f32 %v1735, %v1823
        %v1825 = vpop.f32.mrf.mxu0
        %v1826 = vadd.f32 %v1737, %v1825
        %1827 = vmatmul.bf16.gmra.mxu0 %v838
        %v1828 = vpop.f32.mrf.mxu0
        %v1829 = vadd.f32 %v1740, %v1828
        %v1830 = vpop.f32.mrf.mxu0
        %v1831 = vadd.f32 %v1742, %v1830
        %1832 = vmatmul.bf16.gmra.mxu0 %v842
        %v1833 = vpop.f32.mrf.mxu0
        %v1834 = vadd.f32 %v1745, %v1833
        %v1835 = vpop.f32.mrf.mxu0
        %v1836 = vadd.f32 %v1747, %v1835
        %1837 = vmatmul.bf16.gmra.mxu0 %v846
        %v1838 = vpop.f32.mrf.mxu0
        %v1839 = vadd.f32 %v1750, %v1838
        %v1840 = vpop.f32.mrf.mxu0
        %v1841 = vadd.f32 %v1752, %v1840
        %1842 = vmatmul.bf16.gmra.mxu0 %v850
        %v1843 = vpop.f32.mrf.mxu0
        %v1844 = vadd.f32 %v1755, %v1843
        %v1845 = vpop.f32.mrf.mxu0
        %v1846 = vadd.f32 %v1757, %v1845
        %1847 = vmatmul.bf16.gmra.mxu0 %v854
        %v1848 = vpop.f32.mrf.mxu0
        %v1849 = vadd.f32 %v1760, %v1848
        %v1850 = vpop.f32.mrf.mxu0
        %v1851 = vadd.f32 %v1762, %v1850
        %1852 = vmatmul.bf16.gmra.mxu0 %v858
        %v1853 = vpop.f32.mrf.mxu0
        %v1854 = vadd.f32 %v1765, %v1853
        %v1855 = vpop.f32.mrf.mxu0
        %v1856 = vadd.f32 %v1767, %v1855
        %1857 = vmatmul.bf16.gmra.mxu0 %v862
        %v1858 = vpop.f32.mrf.mxu0
        %v1859 = vadd.f32 %v1770, %v1858
        %v1860 = vpop.f32.mrf.mxu0
        %v1861 = vadd.f32 %v1772, %v1860
        %1862 = vmatmul.bf16.gmra.mxu0 %v866
        %v1863 = vpop.f32.mrf.mxu0
        %v1864 = vadd.f32 %v1775, %v1863
        %v1865 = vpop.f32.mrf.mxu0
        %v1866 = vadd.f32 %v1777, %v1865
        %1867 = vmatmul.bf16.gmra.mxu0 %v870
        %v1868 = vpop.f32.mrf.mxu0
        %v1869 = vadd.f32 %v1780, %v1868
        %v1870 = vpop.f32.mrf.mxu0
        %v1871 = vadd.f32 %v1782, %v1870
        %1872 = vmatmul.bf16.gmra.mxu0 %v874
        %v1873 = vpop.f32.mrf.mxu0
        %v1874 = vadd.f32 %v1785, %v1873
        %v1875 = vpop.f32.mrf.mxu0
        %v1876 = vadd.f32 %v1787, %v1875
        %1877 = vmatmul.bf16.gmra.mxu0 %v878
        %v1878 = vpop.f32.mrf.mxu0
        %v1879 = vadd.f32 %v1790, %v1878
        %v1880 = vpop.f32.mrf.mxu0
        %v1881 = vadd.f32 %v1792, %v1880
        %1882 = vmatmul.bf16.gmra.mxu0 %v882
        %v1883 = vpop.f32.mrf.mxu0
        %v1884 = vadd.f32 %v1795, %v1883
        %v1885 = vpop.f32.mrf.mxu0
        %v1886 = vadd.f32 %v1797, %v1885
        %1887 = vmatmul.bf16.gmra.mxu0 %v886
        %v1888 = vpop.f32.mrf.mxu0
        %v1889 = vadd.f32 %v1800, %v1888
        %v1890 = vpop.f32.mrf.mxu0
        %v1891 = vadd.f32 %v1802, %v1890
        %1892 = vmatmul.bf16.gmra.mxu0 %v890
        %v1893 = vpop.f32.mrf.mxu0
        %v1894 = vadd.f32 %v1805, %v1893
        %v1895 = vpop.f32.mrf.mxu0
        %v1896 = vadd.f32 %v1807, %v1895
        %1897 = vmatmul.bf16.gmra.mxu0 %v894
        %v1898 = vpop.f32.mrf.mxu0
        %v1899 = vadd.f32 %v1810, %v1898
        %v1900 = vpop.f32.mrf.mxu0
        %v1901 = vadd.f32 %v1812, %v1900
        %1902 = vdwg.mxu0
        %1903 = vmatpush.bf16.msra.mxu0 %v1215
        %1904 = vmatpush.bf16.msra.mxu0 %v1213
        %1905 = vmatpush.bf16.msra.mxu0 %v1211
        %1906 = vmatpush.bf16.msra.mxu0 %v1209
        %1907 = vmatpush.bf16.msra.mxu0 %v1207
        %1908 = vmatpush.bf16.msra.mxu0 %v1205
        %1909 = vmatpush.bf16.msra.mxu0 %v1203
        %1910 = vmatpush.bf16.msra.mxu0 %v1201
        %1911 = vmatmul.bf16.gmra.mxu0 %v835
        %v1912 = vpop.f32.mrf.mxu0
        %v1913 = vadd.f32 %v1824, %v1912
        %v1914 = vpop.f32.mrf.mxu0
        %v1915 = vadd.f32 %v1826, %v1914
        %1916 = vmatmul.bf16.gmra.mxu0 %v839
        %v1917 = vpop.f32.mrf.mxu0
        %v1918 = vadd.f32 %v1829, %v1917
        %v1919 = vpop.f32.mrf.mxu0
        %v1920 = vadd.f32 %v1831, %v1919
        %1921 = vmatmul.bf16.gmra.mxu0 %v843
        %v1922 = vpop.f32.mrf.mxu0
        %v1923 = vadd.f32 %v1834, %v1922
        %v1924 = vpop.f32.mrf.mxu0
        %v1925 = vadd.f32 %v1836, %v1924
        %1926 = vmatmul.bf16.gmra.mxu0 %v847
        %v1927 = vpop.f32.mrf.mxu0
        %v1928 = vadd.f32 %v1839, %v1927
        %v1929 = vpop.f32.mrf.mxu0
        %v1930 = vadd.f32 %v1841, %v1929
        %1931 = vmatmul.bf16.gmra.mxu0 %v851
        %v1932 = vpop.f32.mrf.mxu0
        %v1933 = vadd.f32 %v1844, %v1932
        %v1934 = vpop.f32.mrf.mxu0
        %v1935 = vadd.f32 %v1846, %v1934
        %1936 = vmatmul.bf16.gmra.mxu0 %v855
        %v1937 = vpop.f32.mrf.mxu0
        %v1938 = vadd.f32 %v1849, %v1937
        %v1939 = vpop.f32.mrf.mxu0
        %v1940 = vadd.f32 %v1851, %v1939
        %1941 = vmatmul.bf16.gmra.mxu0 %v859
        %v1942 = vpop.f32.mrf.mxu0
        %v1943 = vadd.f32 %v1854, %v1942
        %v1944 = vpop.f32.mrf.mxu0
        %v1945 = vadd.f32 %v1856, %v1944
        %1946 = vmatmul.bf16.gmra.mxu0 %v863
        %v1947 = vpop.f32.mrf.mxu0
        %v1948 = vadd.f32 %v1859, %v1947
        %v1949 = vpop.f32.mrf.mxu0
        %v1950 = vadd.f32 %v1861, %v1949
        %1951 = vmatmul.bf16.gmra.mxu0 %v867
        %v1952 = vpop.f32.mrf.mxu0
        %v1953 = vadd.f32 %v1864, %v1952
        %v1954 = vpop.f32.mrf.mxu0
        %v1955 = vadd.f32 %v1866, %v1954
        %1956 = vmatmul.bf16.gmra.mxu0 %v871
        %v1957 = vpop.f32.mrf.mxu0
        %v1958 = vadd.f32 %v1869, %v1957
        %v1959 = vpop.f32.mrf.mxu0
        %v1960 = vadd.f32 %v1871, %v1959
        %1961 = vmatmul.bf16.gmra.mxu0 %v875
        %v1962 = vpop.f32.mrf.mxu0
        %v1963 = vadd.f32 %v1874, %v1962
        %v1964 = vpop.f32.mrf.mxu0
        %v1965 = vadd.f32 %v1876, %v1964
        %1966 = vmatmul.bf16.gmra.mxu0 %v879
        %v1967 = vpop.f32.mrf.mxu0
        %v1968 = vadd.f32 %v1879, %v1967
        %v1969 = vpop.f32.mrf.mxu0
        %v1970 = vadd.f32 %v1881, %v1969
        %1971 = vmatmul.bf16.gmra.mxu0 %v883
        %v1972 = vpop.f32.mrf.mxu0
        %v1973 = vadd.f32 %v1884, %v1972
        %v1974 = vpop.f32.mrf.mxu0
        %v1975 = vadd.f32 %v1886, %v1974
        %1976 = vmatmul.bf16.gmra.mxu0 %v887
        %v1977 = vpop.f32.mrf.mxu0
        %v1978 = vadd.f32 %v1889, %v1977
        %v1979 = vpop.f32.mrf.mxu0
        %v1980 = vadd.f32 %v1891, %v1979
        %1981 = vmatmul.bf16.gmra.mxu0 %v891
        %v1982 = vpop.f32.mrf.mxu0
        %v1983 = vadd.f32 %v1894, %v1982
        %v1984 = vpop.f32.mrf.mxu0
        %v1985 = vadd.f32 %v1896, %v1984
        %1986 = vmatmul.bf16.gmra.mxu0 %v895
        %v1987 = vpop.f32.mrf.mxu0
        %v1988 = vadd.f32 %v1899, %v1987
        %v1989 = vpop.f32.mrf.mxu0
        %v1990 = vadd.f32 %v1901, %v1989
        %1991 = vdwg.mxu0
        %v1992 = vadd.f32 %v448, %v1557
        %v1993 = vadd.f32 %v449, %v1913
        %v1994 = vadd.f32 %v450, %v1559
        %v1995 = vadd.f32 %v451, %v1915
        %v1996 = vadd.f32 %v452, %v1562
        %v1997 = vadd.f32 %v453, %v1918
        %v1998 = vadd.f32 %v454, %v1564
        %v1999 = vadd.f32 %v455, %v1920
        %v2000 = vadd.f32 %v456, %v1567
        %v2001 = vadd.f32 %v457, %v1923
        %v2002 = vadd.f32 %v458, %v1569
        %v2003 = vadd.f32 %v459, %v1925
        %v2004 = vadd.f32 %v460, %v1572
        %v2005 = vadd.f32 %v461, %v1928
        %v2006 = vadd.f32 %v462, %v1574
        %v2007 = vadd.f32 %v463, %v1930
        %v2008 = vadd.f32 %v464, %v1577
        %v2009 = vadd.f32 %v465, %v1933
        %v2010 = vadd.f32 %v466, %v1579
        %v2011 = vadd.f32 %v467, %v1935
        %v2012 = vadd.f32 %v468, %v1582
        %v2013 = vadd.f32 %v469, %v1938
        %v2014 = vadd.f32 %v470, %v1584
        %v2015 = vadd.f32 %v471, %v1940
        %v2016 = vadd.f32 %v472, %v1587
        %v2017 = vadd.f32 %v473, %v1943
        %v2018 = vadd.f32 %v474, %v1589
        %v2019 = vadd.f32 %v475, %v1945
        %v2020 = vadd.f32 %v476, %v1592
        %v2021 = vadd.f32 %v477, %v1948
        %v2022 = vadd.f32 %v478, %v1594
        %v2023 = vadd.f32 %v479, %v1950
        %v2024 = vadd.f32 %v480, %v1597
        %v2025 = vadd.f32 %v481, %v1953
        %v2026 = vadd.f32 %v482, %v1599
        %v2027 = vadd.f32 %v483, %v1955
        %v2028 = vadd.f32 %v484, %v1602
        %v2029 = vadd.f32 %v485, %v1958
        %v2030 = vadd.f32 %v486, %v1604
        %v2031 = vadd.f32 %v487, %v1960
        %v2032 = vadd.f32 %v488, %v1607
        %v2033 = vadd.f32 %v489, %v1963
        %v2034 = vadd.f32 %v490, %v1609
        %v2035 = vadd.f32 %v491, %v1965
        %v2036 = vadd.f32 %v492, %v1612
        %v2037 = vadd.f32 %v493, %v1968
        %v2038 = vadd.f32 %v494, %v1614
        %v2039 = vadd.f32 %v495, %v1970
        %v2040 = vadd.f32 %v496, %v1617
        %v2041 = vadd.f32 %v497, %v1973
        %v2042 = vadd.f32 %v498, %v1619
        %v2043 = vadd.f32 %v499, %v1975
        %v2044 = vadd.f32 %v500, %v1622
        %v2045 = vadd.f32 %v501, %v1978
        %v2046 = vadd.f32 %v502, %v1624
        %v2047 = vadd.f32 %v503, %v1980
        %v2048 = vadd.f32 %v504, %v1627
        %v2049 = vadd.f32 %v505, %v1983
        %v2050 = vadd.f32 %v506, %v1629
        %v2051 = vadd.f32 %v507, %v1985
        %v2052 = vadd.f32 %v508, %v1632
        %v2053 = vadd.f32 %v509, %v1988
        %v2054 = vadd.f32 %v510, %v1634
        %v2055 = vadd.f32 %v511, %v1990
        %2056 = vst [vmem:[#allocation2] sm:$0xff] %v1992
        %2057 = vst [vmem:[#allocation2 + $0x8] sm:$0xff] %v1993
        %2058 = vst [vmem:[#allocation2 + $0x10] sm:$0xff] %v1994
        %2059 = vst [vmem:[#allocation2 + $0x18] sm:$0xff] %v1995
        %2060 = vst [vmem:[#allocation2 + $0x20] sm:$0xff] %v1996
        %2061 = vst [vmem:[#allocation2 + $0x28] sm:$0xff] %v1997
        %2062 = vst [vmem:[#allocation2 + $0x30] sm:$0xff] %v1998
        %2063 = vst [vmem:[#allocation2 + $0x38] sm:$0xff] %v1999
        %2064 = vst [vmem:[#allocation2 + $0x40] sm:$0xff] %v2000
        %2065 = vst [vmem:[#allocation2 + $0x48] sm:$0xff] %v2001
        %2066 = vst [vmem:[#allocation2 + $0x50] sm:$0xff] %v2002
        %2067 = vst [vmem:[#allocation2 + $0x58] sm:$0xff] %v2003
        %2068 = vst [vmem:[#allocation2 + $0x60] sm:$0xff] %v2004
        %2069 = vst [vmem:[#allocation2 + $0x68] sm:$0xff] %v2005
        %2070 = vst [vmem:[#allocation2 + $0x70] sm:$0xff] %v2006
        %2071 = vst [vmem:[#allocation2 + $0x78] sm:$0xff] %v2007
        %2072 = vst [vmem:[#allocation2 + $0x80] sm:$0xff] %v2008
        %2073 = vst [vmem:[#allocation2 + $0x88] sm:$0xff] %v2009
        %2074 = vst [vmem:[#allocation2 + $0x90] sm:$0xff] %v2010
        %2075 = vst [vmem:[#allocation2 + $0x98] sm:$0xff] %v2011
        %2076 = vst [vmem:[#allocation2 + $0xa0] sm:$0xff] %v2012
        %2077 = vst [vmem:[#allocation2 + $0xa8] sm:$0xff] %v2013
        %2078 = vst [vmem:[#allocation2 + $0xb0] sm:$0xff] %v2014
        %2079 = vst [vmem:[#allocation2 + $0xb8] sm:$0xff] %v2015
        %2080 = vst [vmem:[#allocation2 + $0xc0] sm:$0xff] %v2016
        %2081 = vst [vmem:[#allocation2 + $0xc8] sm:$0xff] %v2017
        %2082 = vst [vmem:[#allocation2 + $0xd0] sm:$0xff] %v2018
        %2083 = vst [vmem:[#allocation2 + $0xd8] sm:$0xff] %v2019
        %2084 = vst [vmem:[#allocation2 + $0xe0] sm:$0xff] %v2020
        %2085 = vst [vmem:[#allocation2 + $0xe8] sm:$0xff] %v2021
        %2086 = vst [vmem:[#allocation2 + $0xf0] sm:$0xff] %v2022
        %2087 = vst [vmem:[#allocation2 + $0xf8] sm:$0xff] %v2023
        %2088 = vst [vmem:[#allocation2 + $0x100] sm:$0xff] %v2024
        %2089 = vst [vmem:[#allocation2 + $0x108] sm:$0xff] %v2025
        %2090 = vst [vmem:[#allocation2 + $0x110] sm:$0xff] %v2026
        %2091 = vst [vmem:[#allocation2 + $0x118] sm:$0xff] %v2027
        %2092 = vst [vmem:[#allocation2 + $0x120] sm:$0xff] %v2028
        %2093 = vst [vmem:[#allocation2 + $0x128] sm:$0xff] %v2029
        %2094 = vst [vmem:[#allocation2 + $0x130] sm:$0xff] %v2030
        %2095 = vst [vmem:[#allocation2 + $0x138] sm:$0xff] %v2031
        %2096 = vst [vmem:[#allocation2 + $0x140] sm:$0xff] %v2032
        %2097 = vst [vmem:[#allocation2 + $0x148] sm:$0xff] %v2033
        %2098 = vst [vmem:[#allocation2 + $0x150] sm:$0xff] %v2034
        %2099 = vst [vmem:[#allocation2 + $0x158] sm:$0xff] %v2035
        %2100 = vst [vmem:[#allocation2 + $0x160] sm:$0xff] %v2036
        %2101 = vst [vmem:[#allocation2 + $0x168] sm:$0xff] %v2037
        %2102 = vst [vmem:[#allocation2 + $0x170] sm:$0xff] %v2038
        %2103 = vst [vmem:[#allocation2 + $0x178] sm:$0xff] %v2039
        %2104 = vst [vmem:[#allocation2 + $0x180] sm:$0xff] %v2040
        %2105 = vst [vmem:[#allocation2 + $0x188] sm:$0xff] %v2041
        %2106 = vst [vmem:[#allocation2 + $0x190] sm:$0xff] %v2042
        %2107 = vst [vmem:[#allocation2 + $0x198] sm:$0xff] %v2043
        %2108 = vst [vmem:[#allocation2 + $0x1a0] sm:$0xff] %v2044
        %2109 = vst [vmem:[#allocation2 + $0x1a8] sm:$0xff] %v2045
        %2110 = vst [vmem:[#allocation2 + $0x1b0] sm:$0xff] %v2046
        %2111 = vst [vmem:[#allocation2 + $0x1b8] sm:$0xff] %v2047
        %2112 = vst [vmem:[#allocation2 + $0x1c0] sm:$0xff] %v2048
        %2113 = vst [vmem:[#allocation2 + $0x1c8] sm:$0xff] %v2049
        %2114 = vst [vmem:[#allocation2 + $0x1d0] sm:$0xff] %v2050
        %2115 = vst [vmem:[#allocation2 + $0x1d8] sm:$0xff] %v2051
        %2116 = vst [vmem:[#allocation2 + $0x1e0] sm:$0xff] %v2052
        %2117 = vst [vmem:[#allocation2 + $0x1e8] sm:$0xff] %v2053
        %2118 = vst [vmem:[#allocation2 + $0x1f0] sm:$0xff] %v2054
        %2119 = vst [vmem:[#allocation2 + $0x1f8] sm:$0xff] %v2055
        %p2120 = scmp.eq.s32.totalorder %s34, 1
        // Predicated region
        $region57: #{tpu_custom_call.1} parent=35 // pred_check
          %p2121 = pneg %p2120
        $region58: #{tpu_custom_call.1} parent=35 // pred_check_branch
          %2123 = sbr.rel (%p2121) target = $region60
        $region59: #{tpu_custom_call.1} parent=35 // pred_region
          %v2124 = vld [vmem:[#allocation2] sm:$0xff]
          %v2125 = vld [vmem:[#allocation2 + $0x8] sm:$0xff]
          %v2126 = vld [vmem:[#allocation2 + $0x10] sm:$0xff]
          %v2127 = vld [vmem:[#allocation2 + $0x18] sm:$0xff]
          %v2128 = vld [vmem:[#allocation2 + $0x20] sm:$0xff]
          %v2129 = vld [vmem:[#allocation2 + $0x28] sm:$0xff]
          %v2130 = vld [vmem:[#allocation2 + $0x30] sm:$0xff]
          %v2131 = vld [vmem:[#allocation2 + $0x38] sm:$0xff]
          %v2132 = vld [vmem:[#allocation2 + $0x40] sm:$0xff]
          %v2133 = vld [vmem:[#allocation2 + $0x48] sm:$0xff]
          %v2134 = vld [vmem:[#allocation2 + $0x50] sm:$0xff]
          %v2135 = vld [vmem:[#allocation2 + $0x58] sm:$0xff]
          %v2136 = vld [vmem:[#allocation2 + $0x60] sm:$0xff]
          %v2137 = vld [vmem:[#allocation2 + $0x68] sm:$0xff]
          %v2138 = vld [vmem:[#allocation2 + $0x70] sm:$0xff]
          %v2139 = vld [vmem:[#allocation2 + $0x78] sm:$0xff]
          %v2140 = vld [vmem:[#allocation2 + $0x80] sm:$0xff]
          %v2141 = vld [vmem:[#allocation2 + $0x88] sm:$0xff]
          %v2142 = vld [vmem:[#allocation2 + $0x90] sm:$0xff]
          %v2143 = vld [vmem:[#allocation2 + $0x98] sm:$0xff]
          %v2144 = vld [vmem:[#allocation2 + $0xa0] sm:$0xff]
          %v2145 = vld [vmem:[#allocation2 + $0xa8] sm:$0xff]
          %v2146 = vld [vmem:[#allocation2 + $0xb0] sm:$0xff]
          %v2147 = vld [vmem:[#allocation2 + $0xb8] sm:$0xff]
          %v2148 = vld [vmem:[#allocation2 + $0xc0] sm:$0xff]
          %v2149 = vld [vmem:[#allocation2 + $0xc8] sm:$0xff]
          %v2150 = vld [vmem:[#allocation2 + $0xd0] sm:$0xff]
          %v2151 = vld [vmem:[#allocation2 + $0xd8] sm:$0xff]
          %v2152 = vld [vmem:[#allocation2 + $0xe0] sm:$0xff]
          %v2153 = vld [vmem:[#allocation2 + $0xe8] sm:$0xff]
          %v2154 = vld [vmem:[#allocation2 + $0xf0] sm:$0xff]
          %v2155 = vld [vmem:[#allocation2 + $0xf8] sm:$0xff]
          %v2156 = vld [vmem:[#allocation2 + $0x100] sm:$0xff]
          %v2157 = vld [vmem:[#allocation2 + $0x108] sm:$0xff]
          %v2158 = vld [vmem:[#allocation2 + $0x110] sm:$0xff]
          %v2159 = vld [vmem:[#allocation2 + $0x118] sm:$0xff]
          %v2160 = vld [vmem:[#allocation2 + $0x120] sm:$0xff]
          %v2161 = vld [vmem:[#allocation2 + $0x128] sm:$0xff]
          %v2162 = vld [vmem:[#allocation2 + $0x130] sm:$0xff]
          %v2163 = vld [vmem:[#allocation2 + $0x138] sm:$0xff]
          %v2164 = vld [vmem:[#allocation2 + $0x140] sm:$0xff]
          %v2165 = vld [vmem:[#allocation2 + $0x148] sm:$0xff]
          %v2166 = vld [vmem:[#allocation2 + $0x150] sm:$0xff]
          %v2167 = vld [vmem:[#allocation2 + $0x158] sm:$0xff]
          %v2168 = vld [vmem:[#allocation2 + $0x160] sm:$0xff]
          %v2169 = vld [vmem:[#allocation2 + $0x168] sm:$0xff]
          %v2170 = vld [vmem:[#allocation2 + $0x170] sm:$0xff]
          %v2171 = vld [vmem:[#allocation2 + $0x178] sm:$0xff]
          %v2172 = vld [vmem:[#allocation2 + $0x180] sm:$0xff]
          %v2173 = vld [vmem:[#allocation2 + $0x188] sm:$0xff]
          %v2174 = vld [vmem:[#allocation2 + $0x190] sm:$0xff]
          %v2175 = vld [vmem:[#allocation2 + $0x198] sm:$0xff]
          %v2176 = vld [vmem:[#allocation2 + $0x1a0] sm:$0xff]
          %v2177 = vld [vmem:[#allocation2 + $0x1a8] sm:$0xff]
          %v2178 = vld [vmem:[#allocation2 + $0x1b0] sm:$0xff]
          %v2179 = vld [vmem:[#allocation2 + $0x1b8] sm:$0xff]
          %v2180 = vld [vmem:[#allocation2 + $0x1c0] sm:$0xff]
          %v2181 = vld [vmem:[#allocation2 + $0x1c8] sm:$0xff]
          %v2182 = vld [vmem:[#allocation2 + $0x1d0] sm:$0xff]
          %v2183 = vld [vmem:[#allocation2 + $0x1d8] sm:$0xff]
          %v2184 = vld [vmem:[#allocation2 + $0x1e0] sm:$0xff]
          %v2185 = vld [vmem:[#allocation2 + $0x1e8] sm:$0xff]
          %v2186 = vld [vmem:[#allocation2 + $0x1f0] sm:$0xff]
          %v2187 = vld [vmem:[#allocation2 + $0x1f8] sm:$0xff]
          %v2188 = vld [vmem:[%s321] sm:$0xff]
          %v2189 = vld [vmem:[%s321 + $0x8] sm:$0xff]
          %v2190 = vld [vmem:[%s321 + $0x10] sm:$0xff]
          %v2191 = vld [vmem:[%s321 + $0x18] sm:$0xff]
          %v2192 = vld [vmem:[%s321 + $0x20] sm:$0xff]
          %v2193 = vld [vmem:[%s321 + $0x28] sm:$0xff]
          %v2194 = vld [vmem:[%s321 + $0x30] sm:$0xff]
          %v2195 = vld [vmem:[%s321 + $0x38] sm:$0xff]
          %v2196 = vld [vmem:[%s321 + $0x40] sm:$0xff]
          %v2197 = vld [vmem:[%s321 + $0x48] sm:$0xff]
          %v2198 = vld [vmem:[%s321 + $0x50] sm:$0xff]
          %v2199 = vld [vmem:[%s321 + $0x58] sm:$0xff]
          %v2200 = vld [vmem:[%s321 + $0x60] sm:$0xff]
          %v2201 = vld [vmem:[%s321 + $0x68] sm:$0xff]
          %v2202 = vld [vmem:[%s321 + $0x70] sm:$0xff]
          %v2203 = vld [vmem:[%s321 + $0x78] sm:$0xff]
          %v2204 = vld [vmem:[%s321 + $0x80] sm:$0xff]
          %v2205 = vld [vmem:[%s321 + $0x88] sm:$0xff]
          %v2206 = vld [vmem:[%s321 + $0x90] sm:$0xff]
          %v2207 = vld [vmem:[%s321 + $0x98] sm:$0xff]
          %v2208 = vld [vmem:[%s321 + $0xa0] sm:$0xff]
          %v2209 = vld [vmem:[%s321 + $0xa8] sm:$0xff]
          %v2210 = vld [vmem:[%s321 + $0xb0] sm:$0xff]
          %v2211 = vld [vmem:[%s321 + $0xb8] sm:$0xff]
          %v2212 = vld [vmem:[%s321 + $0xc0] sm:$0xff]
          %v2213 = vld [vmem:[%s321 + $0xc8] sm:$0xff]
          %v2214 = vld [vmem:[%s321 + $0xd0] sm:$0xff]
          %v2215 = vld [vmem:[%s321 + $0xd8] sm:$0xff]
          %v2216 = vld [vmem:[%s321 + $0xe0] sm:$0xff]
          %v2217 = vld [vmem:[%s321 + $0xe8] sm:$0xff]
          %v2218 = vld [vmem:[%s321 + $0xf0] sm:$0xff]
          %v2219 = vld [vmem:[%s321 + $0xf8] sm:$0xff]
          %v2220 = vld [vmem:[%s331] sm:$0xff]
          %v2221 = vld [vmem:[%s331 + $0x8] sm:$0xff]
          %v2222 = vld [vmem:[%s331 + $0x10] sm:$0xff]
          %v2223 = vld [vmem:[%s331 + $0x18] sm:$0xff]
          %v2224 = vld [vmem:[%s331 + $0x20] sm:$0xff]
          %v2225 = vld [vmem:[%s331 + $0x28] sm:$0xff]
          %v2226 = vld [vmem:[%s331 + $0x30] sm:$0xff]
          %v2227 = vld [vmem:[%s331 + $0x38] sm:$0xff]
          %v2228 = vld [vmem:[%s331 + $0x40] sm:$0xff]
          %v2229 = vld [vmem:[%s331 + $0x48] sm:$0xff]
          %v2230 = vld [vmem:[%s331 + $0x50] sm:$0xff]
          %v2231 = vld [vmem:[%s331 + $0x58] sm:$0xff]
          %v2232 = vld [vmem:[%s331 + $0x60] sm:$0xff]
          %v2233 = vld [vmem:[%s331 + $0x68] sm:$0xff]
          %v2234 = vld [vmem:[%s331 + $0x70] sm:$0xff]
          %v2235 = vld [vmem:[%s331 + $0x78] sm:$0xff]
          %v2236 = vld [vmem:[%s331 + $0x80] sm:$0xff]
          %v2237 = vld [vmem:[%s331 + $0x88] sm:$0xff]
          %v2238 = vld [vmem:[%s331 + $0x90] sm:$0xff]
          %v2239 = vld [vmem:[%s331 + $0x98] sm:$0xff]
          %v2240 = vld [vmem:[%s331 + $0xa0] sm:$0xff]
          %v2241 = vld [vmem:[%s331 + $0xa8] sm:$0xff]
          %v2242 = vld [vmem:[%s331 + $0xb0] sm:$0xff]
          %v2243 = vld [vmem:[%s331 + $0xb8] sm:$0xff]
          %v2244 = vld [vmem:[%s331 + $0xc0] sm:$0xff]
          %v2245 = vld [vmem:[%s331 + $0xc8] sm:$0xff]
          %v2246 = vld [vmem:[%s331 + $0xd0] sm:$0xff]
          %v2247 = vld [vmem:[%s331 + $0xd8] sm:$0xff]
          %v2248 = vld [vmem:[%s331 + $0xe0] sm:$0xff]
          %v2249 = vld [vmem:[%s331 + $0xe8] sm:$0xff]
          %v2250 = vld [vmem:[%s331 + $0xf0] sm:$0xff]
          %v2251 = vld [vmem:[%s331 + $0xf8] sm:$0xff]
          %2252 = vrot.lane.b32.xlu0 %v2124, 64
          %v2253 = vpop.permute.xlu0 %2252
          %2254 = vrot.lane.b32.xlu0 %v2126, 64
          %v2255 = vpop.permute.xlu0 %2254
          %2256 = vrot.lane.b32.xlu0 %v2128, 64
          %v2257 = vpop.permute.xlu0 %2256
          %2258 = vrot.lane.b32.xlu0 %v2130, 64
          %v2259 = vpop.permute.xlu0 %2258
          %2260 = vrot.lane.b32.xlu0 %v2132, 64
          %v2261 = vpop.permute.xlu0 %2260
          %2262 = vrot.lane.b32.xlu0 %v2134, 64
          %v2263 = vpop.permute.xlu0 %2262
          %2264 = vrot.lane.b32.xlu0 %v2136, 64
          %v2265 = vpop.permute.xlu0 %2264
          %2266 = vrot.lane.b32.xlu0 %v2138, 64
          %v2267 = vpop.permute.xlu0 %2266
          %2268 = vrot.lane.b32.xlu0 %v2140, 64
          %v2269 = vpop.permute.xlu0 %2268
          %2270 = vrot.lane.b32.xlu0 %v2142, 64
          %v2271 = vpop.permute.xlu0 %2270
          %2272 = vrot.lane.b32.xlu0 %v2144, 64
          %v2273 = vpop.permute.xlu0 %2272
          %2274 = vrot.lane.b32.xlu0 %v2146, 64
          %v2275 = vpop.permute.xlu0 %2274
          %2276 = vrot.lane.b32.xlu0 %v2148, 64
          %v2277 = vpop.permute.xlu0 %2276
          %2278 = vrot.lane.b32.xlu0 %v2150, 64
          %v2279 = vpop.permute.xlu0 %2278
          %2280 = vrot.lane.b32.xlu0 %v2152, 64
          %v2281 = vpop.permute.xlu0 %2280
          %2282 = vrot.lane.b32.xlu0 %v2154, 64
          %v2283 = vpop.permute.xlu0 %2282
          %2284 = vrot.lane.b32.xlu0 %v2156, 64
          %v2285 = vpop.permute.xlu0 %2284
          %2286 = vrot.lane.b32.xlu0 %v2158, 64
          %v2287 = vpop.permute.xlu0 %2286
          %2288 = vrot.lane.b32.xlu0 %v2160, 64
          %v2289 = vpop.permute.xlu0 %2288
          %2290 = vrot.lane.b32.xlu0 %v2162, 64
          %v2291 = vpop.permute.xlu0 %2290
          %2292 = vrot.lane.b32.xlu0 %v2164, 64
          %v2293 = vpop.permute.xlu0 %2292
          %2294 = vrot.lane.b32.xlu0 %v2166, 64
          %v2295 = vpop.permute.xlu0 %2294
          %2296 = vrot.lane.b32.xlu0 %v2168, 64
          %v2297 = vpop.permute.xlu0 %2296
          %2298 = vrot.lane.b32.xlu0 %v2170, 64
          %v2299 = vpop.permute.xlu0 %2298
          %2300 = vrot.lane.b32.xlu0 %v2172, 64
          %v2301 = vpop.permute.xlu0 %2300
          %2302 = vrot.lane.b32.xlu0 %v2174, 64
          %v2303 = vpop.permute.xlu0 %2302
          %2304 = vrot.lane.b32.xlu0 %v2176, 64
          %v2305 = vpop.permute.xlu0 %2304
          %2306 = vrot.lane.b32.xlu0 %v2178, 64
          %v2307 = vpop.permute.xlu0 %2306
          %2308 = vrot.lane.b32.xlu0 %v2180, 64
          %v2309 = vpop.permute.xlu0 %2308
          %2310 = vrot.lane.b32.xlu0 %v2182, 64
          %v2311 = vpop.permute.xlu0 %2310
          %2312 = vrot.lane.b32.xlu0 %v2184, 64
          %v2313 = vpop.permute.xlu0 %2312
          %2314 = vrot.lane.b32.xlu0 %v2186, 64
          %v2315 = vpop.permute.xlu0 %2314
          %v2316 = vmul.f32 %v2124, %v2188
          %v2317 = vmul.f32 %v2126, %v2189
          %v2318 = vmul.f32 %v2128, %v2190
          %v2319 = vmul.f32 %v2130, %v2191
          %v2320 = vmul.f32 %v2132, %v2192
          %v2321 = vmul.f32 %v2134, %v2193
          %v2322 = vmul.f32 %v2136, %v2194
          %v2323 = vmul.f32 %v2138, %v2195
          %v2324 = vmul.f32 %v2140, %v2196
          %v2325 = vmul.f32 %v2142, %v2197
          %v2326 = vmul.f32 %v2144, %v2198
          %v2327 = vmul.f32 %v2146, %v2199
          %v2328 = vmul.f32 %v2148, %v2200
          %v2329 = vmul.f32 %v2150, %v2201
          %v2330 = vmul.f32 %v2152, %v2202
          %v2331 = vmul.f32 %v2154, %v2203
          %v2332 = vmul.f32 %v2156, %v2204
          %v2333 = vmul.f32 %v2158, %v2205
          %v2334 = vmul.f32 %v2160, %v2206
          %v2335 = vmul.f32 %v2162, %v2207
          %v2336 = vmul.f32 %v2164, %v2208
          %v2337 = vmul.f32 %v2166, %v2209
          %v2338 = vmul.f32 %v2168, %v2210
          %v2339 = vmul.f32 %v2170, %v2211
          %v2340 = vmul.f32 %v2172, %v2212
          %v2341 = vmul.f32 %v2174, %v2213
          %v2342 = vmul.f32 %v2176, %v2214
          %v2343 = vmul.f32 %v2178, %v2215
          %v2344 = vmul.f32 %v2180, %v2216
          %v2345 = vmul.f32 %v2182, %v2217
          %v2346 = vmul.f32 %v2184, %v2218
          %v2347 = vmul.f32 %v2186, %v2219
          %v2348 = vmul.f32 %v2253, %v2220
          %v2349 = vmul.f32 %v2255, %v2221
          %v2350 = vmul.f32 %v2257, %v2222
          %v2351 = vmul.f32 %v2259, %v2223
          %v2352 = vmul.f32 %v2261, %v2224
          %v2353 = vmul.f32 %v2263, %v2225
          %v2354 = vmul.f32 %v2265, %v2226
          %v2355 = vmul.f32 %v2267, %v2227
          %v2356 = vmul.f32 %v2269, %v2228
          %v2357 = vmul.f32 %v2271, %v2229
          %v2358 = vmul.f32 %v2273, %v2230
          %v2359 = vmul.f32 %v2275, %v2231
          %v2360 = vmul.f32 %v2277, %v2232
          %v2361 = vmul.f32 %v2279, %v2233
          %v2362 = vmul.f32 %v2281, %v2234
          %v2363 = vmul.f32 %v2283, %v2235
          %v2364 = vmul.f32 %v2285, %v2236
          %v2365 = vmul.f32 %v2287, %v2237
          %v2366 = vmul.f32 %v2289, %v2238
          %v2367 = vmul.f32 %v2291, %v2239
          %v2368 = vmul.f32 %v2293, %v2240
          %v2369 = vmul.f32 %v2295, %v2241
          %v2370 = vmul.f32 %v2297, %v2242
          %v2371 = vmul.f32 %v2299, %v2243
          %v2372 = vmul.f32 %v2301, %v2244
          %v2373 = vmul.f32 %v2303, %v2245
          %v2374 = vmul.f32 %v2305, %v2246
          %v2375 = vmul.f32 %v2307, %v2247
          %v2376 = vmul.f32 %v2309, %v2248
          %v2377 = vmul.f32 %v2311, %v2249
          %v2378 = vmul.f32 %v2313, %v2250
          %v2379 = vmul.f32 %v2315, %v2251
          %v2380 = vadd.f32 %v2316, %v2348
          %v2381 = vadd.f32 %v2317, %v2349
          %v2382 = vadd.f32 %v2318, %v2350
          %v2383 = vadd.f32 %v2319, %v2351
          %v2384 = vadd.f32 %v2320, %v2352
          %v2385 = vadd.f32 %v2321, %v2353
          %v2386 = vadd.f32 %v2322, %v2354
          %v2387 = vadd.f32 %v2323, %v2355
          %v2388 = vadd.f32 %v2324, %v2356
          %v2389 = vadd.f32 %v2325, %v2357
          %v2390 = vadd.f32 %v2326, %v2358
          %v2391 = vadd.f32 %v2327, %v2359
          %v2392 = vadd.f32 %v2328, %v2360
          %v2393 = vadd.f32 %v2329, %v2361
          %v2394 = vadd.f32 %v2330, %v2362
          %v2395 = vadd.f32 %v2331, %v2363
          %v2396 = vadd.f32 %v2332, %v2364
          %v2397 = vadd.f32 %v2333, %v2365
          %v2398 = vadd.f32 %v2334, %v2366
          %v2399 = vadd.f32 %v2335, %v2367
          %v2400 = vadd.f32 %v2336, %v2368
          %v2401 = vadd.f32 %v2337, %v2369
          %v2402 = vadd.f32 %v2338, %v2370
          %v2403 = vadd.f32 %v2339, %v2371
          %v2404 = vadd.f32 %v2340, %v2372
          %v2405 = vadd.f32 %v2341, %v2373
          %v2406 = vadd.f32 %v2342, %v2374
          %v2407 = vadd.f32 %v2343, %v2375
          %v2408 = vadd.f32 %v2344, %v2376
          %v2409 = vadd.f32 %v2345, %v2377
          %v2410 = vadd.f32 %v2346, %v2378
          %v2411 = vadd.f32 %v2347, %v2379
          %v2412 = vmul.f32 %v2380, 0.088388346
          %v2413 = vmul.f32 %v2381, 0.088388346
          %v2414 = vmul.f32 %v2382, 0.088388346
          %v2415 = vmul.f32 %v2383, 0.088388346
          %v2416 = vmul.f32 %v2384, 0.088388346
          %v2417 = vmul.f32 %v2385, 0.088388346
          %v2418 = vmul.f32 %v2386, 0.088388346
          %v2419 = vmul.f32 %v2387, 0.088388346
          %v2420 = vmul.f32 %v2388, 0.088388346
          %v2421 = vmul.f32 %v2389, 0.088388346
          %v2422 = vmul.f32 %v2390, 0.088388346
          %v2423 = vmul.f32 %v2391, 0.088388346
          %v2424 = vmul.f32 %v2392, 0.088388346
          %v2425 = vmul.f32 %v2393, 0.088388346
          %v2426 = vmul.f32 %v2394, 0.088388346
          %v2427 = vmul.f32 %v2395, 0.088388346
          %v2428 = vmul.f32 %v2396, 0.088388346
          %v2429 = vmul.f32 %v2397, 0.088388346
          %v2430 = vmul.f32 %v2398, 0.088388346
          %v2431 = vmul.f32 %v2399, 0.088388346
          %v2432 = vmul.f32 %v2400, 0.088388346
          %v2433 = vmul.f32 %v2401, 0.088388346
          %v2434 = vmul.f32 %v2402, 0.088388346
          %v2435 = vmul.f32 %v2403, 0.088388346
          %v2436 = vmul.f32 %v2404, 0.088388346
          %v2437 = vmul.f32 %v2405, 0.088388346
          %v2438 = vmul.f32 %v2406, 0.088388346
          %v2439 = vmul.f32 %v2407, 0.088388346
          %v2440 = vmul.f32 %v2408, 0.088388346
          %v2441 = vmul.f32 %v2409, 0.088388346
          %v2442 = vmul.f32 %v2410, 0.088388346
          %v2443 = vmul.f32 %v2411, 0.088388346
          %v2444 = vpack.c.bf16 %v2412, %v2412
          %v2445 = vpack.c.bf16 %v2413, %v2413
          %v2446 = vpack.c.bf16 %v2414, %v2414
          %v2447 = vpack.c.bf16 %v2415, %v2415
          %v2448 = vpack.c.bf16 %v2416, %v2416
          %v2449 = vpack.c.bf16 %v2417, %v2417
          %v2450 = vpack.c.bf16 %v2418, %v2418
          %v2451 = vpack.c.bf16 %v2419, %v2419
          %v2452 = vpack.c.bf16 %v2420, %v2420
          %v2453 = vpack.c.bf16 %v2421, %v2421
          %v2454 = vpack.c.bf16 %v2422, %v2422
          %v2455 = vpack.c.bf16 %v2423, %v2423
          %v2456 = vpack.c.bf16 %v2424, %v2424
          %v2457 = vpack.c.bf16 %v2425, %v2425
          %v2458 = vpack.c.bf16 %v2426, %v2426
          %v2459 = vpack.c.bf16 %v2427, %v2427
          %v2460 = vpack.c.bf16 %v2428, %v2428
          %v2461 = vpack.c.bf16 %v2429, %v2429
          %v2462 = vpack.c.bf16 %v2430, %v2430
          %v2463 = vpack.c.bf16 %v2431, %v2431
          %v2464 = vpack.c.bf16 %v2432, %v2432
          %v2465 = vpack.c.bf16 %v2433, %v2433
          %v2466 = vpack.c.bf16 %v2434, %v2434
          %v2467 = vpack.c.bf16 %v2435, %v2435
          %v2468 = vpack.c.bf16 %v2436, %v2436
          %v2469 = vpack.c.bf16 %v2437, %v2437
          %v2470 = vpack.c.bf16 %v2438, %v2438
          %v2471 = vpack.c.bf16 %v2439, %v2439
          %v2472 = vpack.c.bf16 %v2440, %v2440
          %v2473 = vpack.c.bf16 %v2441, %v2441
          %v2474 = vpack.c.bf16 %v2442, %v2442
          %v2475 = vpack.c.bf16 %v2443, %v2443
          %2476 = vst [vmem:[%s371] sm:$0xf] %v2444
          %2477 = vst [vmem:[%s371 + $0x8] sm:$0xf] %v2445
          %2478 = vst [vmem:[%s371 + $0x10] sm:$0xf] %v2446
          %2479 = vst [vmem:[%s371 + $0x18] sm:$0xf] %v2447
          %2480 = vst [vmem:[%s371 + $0x20] sm:$0xf] %v2448
          %2481 = vst [vmem:[%s371 + $0x28] sm:$0xf] %v2449
          %2482 = vst [vmem:[%s371 + $0x30] sm:$0xf] %v2450
          %2483 = vst [vmem:[%s371 + $0x38] sm:$0xf] %v2451
          %2484 = vst [vmem:[%s371 + $0x40] sm:$0xf] %v2452
          %2485 = vst [vmem:[%s371 + $0x48] sm:$0xf] %v2453
          %2486 = vst [vmem:[%s371 + $0x50] sm:$0xf] %v2454
          %2487 = vst [vmem:[%s371 + $0x58] sm:$0xf] %v2455
          %2488 = vst [vmem:[%s371 + $0x60] sm:$0xf] %v2456
          %2489 = vst [vmem:[%s371 + $0x68] sm:$0xf] %v2457
          %2490 = vst [vmem:[%s371 + $0x70] sm:$0xf] %v2458
          %2491 = vst [vmem:[%s371 + $0x78] sm:$0xf] %v2459
          %2492 = vst [vmem:[%s371 + $0x80] sm:$0xf] %v2460
          %2493 = vst [vmem:[%s371 + $0x88] sm:$0xf] %v2461
          %2494 = vst [vmem:[%s371 + $0x90] sm:$0xf] %v2462
          %2495 = vst [vmem:[%s371 + $0x98] sm:$0xf] %v2463
          %2496 = vst [vmem:[%s371 + $0xa0] sm:$0xf] %v2464
          %2497 = vst [vmem:[%s371 + $0xa8] sm:$0xf] %v2465
          %2498 = vst [vmem:[%s371 + $0xb0] sm:$0xf] %v2466
          %2499 = vst [vmem:[%s371 + $0xb8] sm:$0xf] %v2467
          %2500 = vst [vmem:[%s371 + $0xc0] sm:$0xf] %v2468
          %2501 = vst [vmem:[%s371 + $0xc8] sm:$0xf] %v2469
          %2502 = vst [vmem:[%s371 + $0xd0] sm:$0xf] %v2470
          %2503 = vst [vmem:[%s371 + $0xd8] sm:$0xf] %v2471
          %2504 = vst [vmem:[%s371 + $0xe0] sm:$0xf] %v2472
          %2505 = vst [vmem:[%s371 + $0xe8] sm:$0xf] %v2473
          %2506 = vst [vmem:[%s371 + $0xf0] sm:$0xf] %v2474
          %2507 = vst [vmem:[%s371 + $0xf8] sm:$0xf] %v2475
          %2508 = vrot.lane.b32.xlu0 %v2125, 64
          %v2509 = vpop.permute.xlu0 %2508
          %2510 = vrot.lane.b32.xlu0 %v2127, 64
          %v2511 = vpop.permute.xlu0 %2510
          %2512 = vrot.lane.b32.xlu0 %v2129, 64
          %v2513 = vpop.permute.xlu0 %2512
          %2514 = vrot.lane.b32.xlu0 %v2131, 64
          %v2515 = vpop.permute.xlu0 %2514
          %2516 = vrot.lane.b32.xlu0 %v2133, 64
          %v2517 = vpop.permute.xlu0 %2516
          %2518 = vrot.lane.b32.xlu0 %v2135, 64
          %v2519 = vpop.permute.xlu0 %2518
          %2520 = vrot.lane.b32.xlu0 %v2137, 64
          %v2521 = vpop.permute.xlu0 %2520
          %2522 = vrot.lane.b32.xlu0 %v2139, 64
          %v2523 = vpop.permute.xlu0 %2522
          %2524 = vrot.lane.b32.xlu0 %v2141, 64
          %v2525 = vpop.permute.xlu0 %2524
          %2526 = vrot.lane.b32.xlu0 %v2143, 64
          %v2527 = vpop.permute.xlu0 %2526
          %2528 = vrot.lane.b32.xlu0 %v2145, 64
          %v2529 = vpop.permute.xlu0 %2528
          %2530 = vrot.lane.b32.xlu0 %v2147, 64
          %v2531 = vpop.permute.xlu0 %2530
          %2532 = vrot.lane.b32.xlu0 %v2149, 64
          %v2533 = vpop.permute.xlu0 %2532
          %2534 = vrot.lane.b32.xlu0 %v2151, 64
          %v2535 = vpop.permute.xlu0 %2534
          %2536 = vrot.lane.b32.xlu0 %v2153, 64
          %v2537 = vpop.permute.xlu0 %2536
          %2538 = vrot.lane.b32.xlu0 %v2155, 64
          %v2539 = vpop.permute.xlu0 %2538
          %2540 = vrot.lane.b32.xlu0 %v2157, 64
          %v2541 = vpop.permute.xlu0 %2540
          %2542 = vrot.lane.b32.xlu0 %v2159, 64
          %v2543 = vpop.permute.xlu0 %2542
          %2544 = vrot.lane.b32.xlu0 %v2161, 64
          %v2545 = vpop.permute.xlu0 %2544
          %2546 = vrot.lane.b32.xlu0 %v2163, 64
          %v2547 = vpop.permute.xlu0 %2546
          %2548 = vrot.lane.b32.xlu0 %v2165, 64
          %v2549 = vpop.permute.xlu0 %2548
          %2550 = vrot.lane.b32.xlu0 %v2167, 64
          %v2551 = vpop.permute.xlu0 %2550
          %2552 = vrot.lane.b32.xlu0 %v2169, 64
          %v2553 = vpop.permute.xlu0 %2552
          %2554 = vrot.lane.b32.xlu0 %v2171, 64
          %v2555 = vpop.permute.xlu0 %2554
          %2556 = vrot.lane.b32.xlu0 %v2173, 64
          %v2557 = vpop.permute.xlu0 %2556
          %2558 = vrot.lane.b32.xlu0 %v2175, 64
          %v2559 = vpop.permute.xlu0 %2558
          %2560 = vrot.lane.b32.xlu0 %v2177, 64
          %v2561 = vpop.permute.xlu0 %2560
          %2562 = vrot.lane.b32.xlu0 %v2179, 64
          %v2563 = vpop.permute.xlu0 %2562
          %2564 = vrot.lane.b32.xlu0 %v2181, 64
          %v2565 = vpop.permute.xlu0 %2564
          %2566 = vrot.lane.b32.xlu0 %v2183, 64
          %v2567 = vpop.permute.xlu0 %2566
          %2568 = vrot.lane.b32.xlu0 %v2185, 64
          %v2569 = vpop.permute.xlu0 %2568
          %2570 = vrot.lane.b32.xlu0 %v2187, 64
          %v2571 = vpop.permute.xlu0 %2570
          %v2572 = vmul.f32 %v2125, %v2188
          %v2573 = vmul.f32 %v2127, %v2189
          %v2574 = vmul.f32 %v2129, %v2190
          %v2575 = vmul.f32 %v2131, %v2191
          %v2576 = vmul.f32 %v2133, %v2192
          %v2577 = vmul.f32 %v2135, %v2193
          %v2578 = vmul.f32 %v2137, %v2194
          %v2579 = vmul.f32 %v2139, %v2195
          %v2580 = vmul.f32 %v2141, %v2196
          %v2581 = vmul.f32 %v2143, %v2197
          %v2582 = vmul.f32 %v2145, %v2198
          %v2583 = vmul.f32 %v2147, %v2199
          %v2584 = vmul.f32 %v2149, %v2200
          %v2585 = vmul.f32 %v2151, %v2201
          %v2586 = vmul.f32 %v2153, %v2202
          %v2587 = vmul.f32 %v2155, %v2203
          %v2588 = vmul.f32 %v2157, %v2204
          %v2589 = vmul.f32 %v2159, %v2205
          %v2590 = vmul.f32 %v2161, %v2206
          %v2591 = vmul.f32 %v2163, %v2207
          %v2592 = vmul.f32 %v2165, %v2208
          %v2593 = vmul.f32 %v2167, %v2209
          %v2594 = vmul.f32 %v2169, %v2210
          %v2595 = vmul.f32 %v2171, %v2211
          %v2596 = vmul.f32 %v2173, %v2212
          %v2597 = vmul.f32 %v2175, %v2213
          %v2598 = vmul.f32 %v2177, %v2214
          %v2599 = vmul.f32 %v2179, %v2215
          %v2600 = vmul.f32 %v2181, %v2216
          %v2601 = vmul.f32 %v2183, %v2217
          %v2602 = vmul.f32 %v2185, %v2218
          %v2603 = vmul.f32 %v2187, %v2219
          %v2604 = vmul.f32 %v2509, %v2220
          %v2605 = vmul.f32 %v2511, %v2221
          %v2606 = vmul.f32 %v2513, %v2222
          %v2607 = vmul.f32 %v2515, %v2223
          %v2608 = vmul.f32 %v2517, %v2224
          %v2609 = vmul.f32 %v2519, %v2225
          %v2610 = vmul.f32 %v2521, %v2226
          %v2611 = vmul.f32 %v2523, %v2227
          %v2612 = vmul.f32 %v2525, %v2228
          %v2613 = vmul.f32 %v2527, %v2229
          %v2614 = vmul.f32 %v2529, %v2230
          %v2615 = vmul.f32 %v2531, %v2231
          %v2616 = vmul.f32 %v2533, %v2232
          %v2617 = vmul.f32 %v2535, %v2233
          %v2618 = vmul.f32 %v2537, %v2234
          %v2619 = vmul.f32 %v2539, %v2235
          %v2620 = vmul.f32 %v2541, %v2236
          %v2621 = vmul.f32 %v2543, %v2237
          %v2622 = vmul.f32 %v2545, %v2238
          %v2623 = vmul.f32 %v2547, %v2239
          %v2624 = vmul.f32 %v2549, %v2240
          %v2625 = vmul.f32 %v2551, %v2241
          %v2626 = vmul.f32 %v2553, %v2242
          %v2627 = vmul.f32 %v2555, %v2243
          %v2628 = vmul.f32 %v2557, %v2244
          %v2629 = vmul.f32 %v2559, %v2245
          %v2630 = vmul.f32 %v2561, %v2246
          %v2631 = vmul.f32 %v2563, %v2247
          %v2632 = vmul.f32 %v2565, %v2248
          %v2633 = vmul.f32 %v2567, %v2249
          %v2634 = vmul.f32 %v2569, %v2250
          %v2635 = vmul.f32 %v2571, %v2251
          %v2636 = vadd.f32 %v2572, %v2604
          %v2637 = vadd.f32 %v2573, %v2605
          %v2638 = vadd.f32 %v2574, %v2606
          %v2639 = vadd.f32 %v2575, %v2607
          %v2640 = vadd.f32 %v2576, %v2608
          %v2641 = vadd.f32 %v2577, %v2609
          %v2642 = vadd.f32 %v2578, %v2610
          %v2643 = vadd.f32 %v2579, %v2611
          %v2644 = vadd.f32 %v2580, %v2612
          %v2645 = vadd.f32 %v2581, %v2613
          %v2646 = vadd.f32 %v2582, %v2614
          %v2647 = vadd.f32 %v2583, %v2615
          %v2648 = vadd.f32 %v2584, %v2616
          %v2649 = vadd.f32 %v2585, %v2617
          %v2650 = vadd.f32 %v2586, %v2618
          %v2651 = vadd.f32 %v2587, %v2619
          %v2652 = vadd.f32 %v2588, %v2620
          %v2653 = vadd.f32 %v2589, %v2621
          %v2654 = vadd.f32 %v2590, %v2622
          %v2655 = vadd.f32 %v2591, %v2623
          %v2656 = vadd.f32 %v2592, %v2624
          %v2657 = vadd.f32 %v2593, %v2625
          %v2658 = vadd.f32 %v2594, %v2626
          %v2659 = vadd.f32 %v2595, %v2627
          %v2660 = vadd.f32 %v2596, %v2628
          %v2661 = vadd.f32 %v2597, %v2629
          %v2662 = vadd.f32 %v2598, %v2630
          %v2663 = vadd.f32 %v2599, %v2631
          %v2664 = vadd.f32 %v2600, %v2632
          %v2665 = vadd.f32 %v2601, %v2633
          %v2666 = vadd.f32 %v2602, %v2634
          %v2667 = vadd.f32 %v2603, %v2635
          %v2668 = vmul.f32 %v2636, 0.088388346
          %v2669 = vmul.f32 %v2637, 0.088388346
          %v2670 = vmul.f32 %v2638, 0.088388346
          %v2671 = vmul.f32 %v2639, 0.088388346
          %v2672 = vmul.f32 %v2640, 0.088388346
          %v2673 = vmul.f32 %v2641, 0.088388346
          %v2674 = vmul.f32 %v2642, 0.088388346
          %v2675 = vmul.f32 %v2643, 0.088388346
          %v2676 = vmul.f32 %v2644, 0.088388346
          %v2677 = vmul.f32 %v2645, 0.088388346
          %v2678 = vmul.f32 %v2646, 0.088388346
          %v2679 = vmul.f32 %v2647, 0.088388346
          %v2680 = vmul.f32 %v2648, 0.088388346
          %v2681 = vmul.f32 %v2649, 0.088388346
          %v2682 = vmul.f32 %v2650, 0.088388346
          %v2683 = vmul.f32 %v2651, 0.088388346
          %v2684 = vmul.f32 %v2652, 0.088388346
          %v2685 = vmul.f32 %v2653, 0.088388346
          %v2686 = vmul.f32 %v2654, 0.088388346
          %v2687 = vmul.f32 %v2655, 0.088388346
          %v2688 = vmul.f32 %v2656, 0.088388346
          %v2689 = vmul.f32 %v2657, 0.088388346
          %v2690 = vmul.f32 %v2658, 0.088388346
          %v2691 = vmul.f32 %v2659, 0.088388346
          %v2692 = vmul.f32 %v2660, 0.088388346
          %v2693 = vmul.f32 %v2661, 0.088388346
          %v2694 = vmul.f32 %v2662, 0.088388346
          %v2695 = vmul.f32 %v2663, 0.088388346
          %v2696 = vmul.f32 %v2664, 0.088388346
          %v2697 = vmul.f32 %v2665, 0.088388346
          %v2698 = vmul.f32 %v2666, 0.088388346
          %v2699 = vmul.f32 %v2667, 0.088388346
          %v2700 = vpack.c.bf16 %v2668, %v2668
          %v2701 = vpack.c.bf16 %v2669, %v2669
          %v2702 = vpack.c.bf16 %v2670, %v2670
          %v2703 = vpack.c.bf16 %v2671, %v2671
          %v2704 = vpack.c.bf16 %v2672, %v2672
          %v2705 = vpack.c.bf16 %v2673, %v2673
          %v2706 = vpack.c.bf16 %v2674, %v2674
          %v2707 = vpack.c.bf16 %v2675, %v2675
          %v2708 = vpack.c.bf16 %v2676, %v2676
          %v2709 = vpack.c.bf16 %v2677, %v2677
          %v2710 = vpack.c.bf16 %v2678, %v2678
          %v2711 = vpack.c.bf16 %v2679, %v2679
          %v2712 = vpack.c.bf16 %v2680, %v2680
          %v2713 = vpack.c.bf16 %v2681, %v2681
          %v2714 = vpack.c.bf16 %v2682, %v2682
          %v2715 = vpack.c.bf16 %v2683, %v2683
          %v2716 = vpack.c.bf16 %v2684, %v2684
          %v2717 = vpack.c.bf16 %v2685, %v2685
          %v2718 = vpack.c.bf16 %v2686, %v2686
          %v2719 = vpack.c.bf16 %v2687, %v2687
          %v2720 = vpack.c.bf16 %v2688, %v2688
          %v2721 = vpack.c.bf16 %v2689, %v2689
          %v2722 = vpack.c.bf16 %v2690, %v2690
          %v2723 = vpack.c.bf16 %v2691, %v2691
          %v2724 = vpack.c.bf16 %v2692, %v2692
          %v2725 = vpack.c.bf16 %v2693, %v2693
          %v2726 = vpack.c.bf16 %v2694, %v2694
          %v2727 = vpack.c.bf16 %v2695, %v2695
          %v2728 = vpack.c.bf16 %v2696, %v2696
          %v2729 = vpack.c.bf16 %v2697, %v2697
          %v2730 = vpack.c.bf16 %v2698, %v2698
          %v2731 = vpack.c.bf16 %v2699, %v2699
          %2732 = vst [vmem:[%s371 + $0x4] sm:$0xf] %v2700
          %2733 = vst [vmem:[%s371 + $0xc] sm:$0xf] %v2701
          %2734 = vst [vmem:[%s371 + $0x14] sm:$0xf] %v2702
          %2735 = vst [vmem:[%s371 + $0x1c] sm:$0xf] %v2703
          %2736 = vst [vmem:[%s371 + $0x24] sm:$0xf] %v2704
          %2737 = vst [vmem:[%s371 + $0x2c] sm:$0xf] %v2705
          %2738 = vst [vmem:[%s371 + $0x34] sm:$0xf] %v2706
          %2739 = vst [vmem:[%s371 + $0x3c] sm:$0xf] %v2707
          %2740 = vst [vmem:[%s371 + $0x44] sm:$0xf] %v2708
          %2741 = vst [vmem:[%s371 + $0x4c] sm:$0xf] %v2709
          %2742 = vst [vmem:[%s371 + $0x54] sm:$0xf] %v2710
          %2743 = vst [vmem:[%s371 + $0x5c] sm:$0xf] %v2711
          %2744 = vst [vmem:[%s371 + $0x64] sm:$0xf] %v2712
          %2745 = vst [vmem:[%s371 + $0x6c] sm:$0xf] %v2713
          %2746 = vst [vmem:[%s371 + $0x74] sm:$0xf] %v2714
          %2747 = vst [vmem:[%s371 + $0x7c] sm:$0xf] %v2715
          %2748 = vst [vmem:[%s371 + $0x84] sm:$0xf] %v2716
          %2749 = vst [vmem:[%s371 + $0x8c] sm:$0xf] %v2717
          %2750 = vst [vmem:[%s371 + $0x94] sm:$0xf] %v2718
          %2751 = vst [vmem:[%s371 + $0x9c] sm:$0xf] %v2719
          %2752 = vst [vmem:[%s371 + $0xa4] sm:$0xf] %v2720
          %2753 = vst [vmem:[%s371 + $0xac] sm:$0xf] %v2721
          %2754 = vst [vmem:[%s371 + $0xb4] sm:$0xf] %v2722
          %2755 = vst [vmem:[%s371 + $0xbc] sm:$0xf] %v2723
          %2756 = vst [vmem:[%s371 + $0xc4] sm:$0xf] %v2724
          %2757 = vst [vmem:[%s371 + $0xcc] sm:$0xf] %v2725
          %2758 = vst [vmem:[%s371 + $0xd4] sm:$0xf] %v2726
          %2759 = vst [vmem:[%s371 + $0xdc] sm:$0xf] %v2727
          %2760 = vst [vmem:[%s371 + $0xe4] sm:$0xf] %v2728
          %2761 = vst [vmem:[%s371 + $0xec] sm:$0xf] %v2729
          %2762 = vst [vmem:[%s371 + $0xf4] sm:$0xf] %v2730
          %2763 = vst [vmem:[%s371 + $0xfc] sm:$0xf] %v2731
        $region60: #{tpu_custom_call.1} parent=35 // pred_fallthru
          _
        %s2764 = sand.u32 %s164, 1
        %s2765 = scalar_lea.sflag [#allocation5], %s2764
        %s2766 = sand.u32 %s164, 1
        %s2767 = smul.addr %s2766, 256
        %s2768 = scalar_lea.vmem [#allocation11], %s2767
        // Predicated region
        $region61: #{tpu_custom_call.1} parent=35 // pred_check
          %p2769 = pneg %p174
        $region62: #{tpu_custom_call.1} parent=35 // pred_check_branch
          %2771 = sbr.rel (%p2769) target = $region64
        $region63: #{tpu_custom_call.1} parent=35 // pred_region
          %s2772 = smul.u32 32, %s32
          %s2773 = smul.u32 2, %s33
          %2775 = vsyncadd %s2765, 0
          %s2776 = smul.addr %s2772, 8
          %s2777 = sadd.s32 %s2773, %s2776
          %s2778 = smul.addr %s2777, 4
          %s2779 = scalar_lea.hbm %s4, %s2778
          %s2780 = sshll.u32 %s2768, 4
          %s2781 = int_to_ptr.vmem [resolvable:$true] %s2780
          %s2782 = sshll.u32 %s2779, 4
          %s2783 = int_to_ptr.hbm [resolvable:$true] %s2782
          %2788 = dma.vmem_to_hbm [thread:$0]  %s2781, 4096, %s2783, %s2765, 128, 512, 8
        $region64: #{tpu_custom_call.1} parent=35 // pred_fallthru
          _
      $region36: #{tpu_custom_call.1} parent=5 // pred_fallthru
        _
      %p2789 = scmp.le.s32.totalorder 2, %s22
      // Predicated region
      $region65: #{tpu_custom_call.1} parent=5 // pred_check
        %p2790 = pneg %p2789
      $region66: #{tpu_custom_call.1} parent=5 // pred_check_branch
        %2792 = sbr.rel (%p2790) target = $region68
      $region67: #{tpu_custom_call.1} parent=5 // pred_region
        %s2793 = ssub.s32 %s22, 2
        // Predicated region
        $region69: #{tpu_custom_call.1} parent=67 // pred_check
          %p2794 = pneg %p180
        $region70: #{tpu_custom_call.1} parent=67 // pred_check_branch
          %2796 = sbr.rel (%p2794) target = $region72
        $region71: #{tpu_custom_call.1} parent=67 // pred_region
          %s2797 = sand.u32 %s165, 1
          %s2798 = scalar_lea.sflag [#allocation5], %s2797
          %s2799 = sand.u32 %s165, 1
          %s2800 = smul.addr %s2799, 256
          %s2801 = scalar_lea.vmem [#allocation11], %s2800
          %2803 = dma.done %s2798, 4096
        $region72: #{tpu_custom_call.1} parent=67 // pred_fallthru
          _
      $region68: #{tpu_custom_call.1} parent=5 // pred_fallthru
        _
    $region6: #{tpu_custom_call.1} parent=1 // loop_footer
      %s26 = sadd.s32 1, %s22
    $region7: #{tpu_custom_call.1} parent=1 // loop_footer_branch
      %21 = sbr.rel target = $region3
    $region8: #{tpu_custom_call.1} parent=1 // loop_exit
      _
    %2804 = vsyncpa [#allocation4], 1
    %s2805 = scalar_lea.sflag [#allocation4], 1
    %2806 = vsyncpa %s2805, 1
    %2807 = vsyncpa [#allocation7], 1
    %s2808 = scalar_lea.sflag [#allocation7], 1
    %2809 = vsyncpa %s2808, 1
    %2810 = vsyncpa [#allocation10], 1
    %s2811 = scalar_lea.sflag [#allocation10], 1
    %2812 = vsyncpa %s2811, 1
    %2813 = vsyncpa [#allocation5], 1
    %s2814 = scalar_lea.sflag [#allocation5], 1
    %2815 = vsyncpa %s2814, 1

</llo_original>
